<compile_context>
chip_gen: v6e
topology: v6e:2x2x1
jax: 0.10.0
libtpu: 0.0.40
codegen_flags: <defaults>
</compile_context>

<pallas_src>
import functools

import jax
import jax.numpy as jnp
from jax.experimental import pallas as pl
from jax.experimental.pallas import tpu as pltpu


TILE_B = 128          # MXU-row-filling batch tile (128 also caps correctly for v5e)
OUT_PAD = 128         # lane-dense packed output width: [probs..., value, zeros...]
NEG_PAD = -1e30       # logit for padded actor columns => softmax prob exactly 0


def _actor_critic_kernel(
    value_col,                                  # static: slab column holding the value
    x_ref,
    aw1, ab1, aw2, ab2, aw3, ab3, aw4, ab4,     # actor (weights bf16, biases f32)
    cw1, cb1, cw2, cb2, cw3, cb3, cw4r, cb4,    # critic (cw4r is a (1, H3) f32 row)
    out_ref,
):
    x = x_ref[...]                              # (TILE_B, IN) f32

    def trunk(h, w1, b1, w2, b2, w3, b3):
        h = jnp.dot(h.astype(jnp.bfloat16), w1[...],
                    preferred_element_type=jnp.float32) + b1[...]
        h = jnp.maximum(h, 0.0)
        h = jnp.dot(h.astype(jnp.bfloat16), w2[...],
                    preferred_element_type=jnp.float32) + b2[...]
        h = jnp.maximum(h, 0.0)
        h = jnp.dot(h.astype(jnp.bfloat16), w3[...],
                    preferred_element_type=jnp.float32) + b3[...]
        h = jnp.maximum(h, 0.0)
        return h

    # ---- actor: 3x (Linear+ReLU) -> Linear (padded to 128 lanes) -> Softmax ----
    ha = trunk(x, aw1, ab1, aw2, ab2, aw3, ab3)
    logits = jnp.dot(ha.astype(jnp.bfloat16), aw4[...],
                     preferred_element_type=jnp.float32) + ab4[...]   # (TILE_B, 128)
    m = jnp.max(logits, axis=-1, keepdims=True)
    e = jnp.exp(logits - m)                     # padded cols: exp(-1e30 - m) == 0
    probs = e * pl.reciprocal(jnp.sum(e, axis=-1, keepdims=True), approx=True)

    # ---- critic: 3x (Linear+ReLU) -> Linear(->1) as VPU mul + lane reduce ----
    hc = trunk(x, cw1, cb1, cw2, cb2, cw3, cb3)
    value = jnp.sum(hc * cw4r[...], axis=-1, keepdims=True) + cb4[...]  # (TILE_B, 1)

    # ---- pack into a single lane-dense slab: [probs..., value, 0...] ----
    col = jax.lax.broadcasted_iota(jnp.int32, probs.shape, 1)
    out_ref[...] = jnp.where(col == value_col, value, probs)


def make_params(key, input_size, output_size):
    """Deterministic synthetic Linear params, PyTorch-style U(-1/sqrt(din))."""
    dims_actor = [input_size, 10 * input_size, 20 * input_size,
                  10 * input_size, output_size]
    dims_critic = [input_size, 10 * input_size, 20 * input_size,
                   10 * input_size, 1]

    def mk(key, dims):
        params = []
        for din, dout in zip(dims[:-1], dims[1:]):
            key, kw, kb = jax.random.split(key, 3)
            bound = 1.0 / float(din) ** 0.5
            w = jax.random.uniform(kw, (din, dout), jnp.float32, -bound, bound)
            b = jax.random.uniform(kb, (1, dout), jnp.float32, -bound, bound)
            params += [w, b]
        return key, params

    key, actor = mk(key, dims_actor)
    key, critic = mk(key, dims_critic)
    return actor, critic


def prepare_kernel_params(actor, critic, output_size):
    """Cast weights to bf16, pad the actor head to 128 lanes, row-ify cw4."""
    aw1, ab1, aw2, ab2, aw3, ab3, aw4, ab4 = actor
    cw1, cb1, cw2, cb2, cw3, cb3, cw4, cb4 = critic

    bf = lambda w: w.astype(jnp.bfloat16)
    h3 = aw4.shape[0]

    # Actor head padded to a full 128-lane tile; padded bias = NEG_PAD so the
    # corresponding softmax probabilities are exactly zero.
    aw4_p = jnp.zeros((h3, OUT_PAD), jnp.float32).at[:, :output_size].set(aw4)
    ab4_p = jnp.full((1, OUT_PAD), NEG_PAD, jnp.float32).at[:, :output_size].set(ab4)

    # Critic head as a broadcastable (1, H3) f32 row (VPU path, no MXU).
    cw4_row = cw4.reshape(1, h3)

    return (
        bf(aw1), ab1, bf(aw2), ab2, bf(aw3), ab3, bf(aw4_p), ab4_p,
        bf(cw1), cb1, bf(cw2), cb2, bf(cw3), cb3, cw4_row, cb4,
    )


def actor_critic_forward(x, kernel_params, output_size):
    """x: (B, input_size) f32. Returns (probs (B, output_size), value (B, 1))."""
    B, in_size = x.shape
    b_pad = ((B + TILE_B - 1) // TILE_B) * TILE_B
    if b_pad != B:
        x = jnp.pad(x, ((0, b_pad - B), (0, 0)))

    x_spec = pl.BlockSpec((TILE_B, in_size), lambda i: (i, 0))
    out_spec = pl.BlockSpec((TILE_B, OUT_PAD), lambda i: (i, 0))
    # Weights/biases: full array, same block index every grid step => DMA'd
    # once, kept VMEM-resident across batch tiles.
    resident = lambda p: pl.BlockSpec(p.shape, lambda i: (0, 0))

    slab = pl.pallas_call(
        functools.partial(_actor_critic_kernel, output_size),
        out_shape=jax.ShapeDtypeStruct((b_pad, OUT_PAD), jnp.float32),
        grid_spec=pltpu.PrefetchScalarGridSpec(
            num_scalar_prefetch=0,
            grid=(b_pad // TILE_B,),
            in_specs=[x_spec] + [resident(p) for p in kernel_params],
            out_specs=out_spec,
        ),
        compiler_params=pltpu.CompilerParams(
            dimension_semantics=("parallel",),
            vmem_limit_bytes=32 * 1024 * 1024,
        ),
    )(x, *kernel_params)

    probs = slab[:B, :output_size]
    value = slab[:B, output_size:output_size + 1]
    return probs, value


def reference_forward(x, actor, critic):
    """Plain-JAX reference using the same bf16-rounded weights (f32 math)."""
    aw1, ab1, aw2, ab2, aw3, ab3, aw4, ab4 = actor
    cw1, cb1, cw2, cb2, cw3, cb3, cw4, cb4 = critic

    rw = lambda w: w.astype(jnp.bfloat16).astype(jnp.float32)
    dot = functools.partial(jnp.dot, precision=jax.lax.Precision.HIGHEST)

    def trunk(h, w1, b1, w2, b2, w3, b3):
        h = jnp.maximum(dot(h, rw(w1)) + b1, 0.0)
        h = jnp.maximum(dot(h, rw(w2)) + b2, 0.0)
        h = jnp.maximum(dot(h, rw(w3)) + b3, 0.0)
        return h

    logits = dot(trunk(x, aw1, ab1, aw2, ab2, aw3, ab3), rw(aw4)) + ab4
    probs = jax.nn.softmax(logits, axis=-1)
    value = dot(trunk(x, cw1, cb1, cw2, cb2, cw3, cb3), cw4) + cb4
    return probs, value


if __name__ == "__main__":
    INPUT_SIZE = 16     # -> hidden dims 160 / 320 / 160 (10x / 20x / 10x input)
    OUTPUT_SIZE = 8
    BATCH = 8

    key = jax.random.PRNGKey(0)
    key, kx = jax.random.split(key)
    x = jax.random.normal(kx, (BATCH, INPUT_SIZE), jnp.float32)
    actor, critic = make_params(key, INPUT_SIZE, OUTPUT_SIZE)
    kparams = prepare_kernel_params(actor, critic, OUTPUT_SIZE)

    probs, value = actor_critic_forward(x, kparams, OUTPUT_SIZE)
    jax.block_until_ready((probs, value))

    ref_probs, ref_value = reference_forward(x, actor, critic)
    assert probs.shape == (BATCH, OUTPUT_SIZE) and value.shape == (BATCH, 1)
    # bf16 weight streaming + bf16 MXU operands + approx reciprocal => loosened
    # tolerances (vs 1e-5 in the pure-f32 version), per review guidance.
    assert jnp.allclose(probs, ref_probs, atol=2e-2, rtol=2e-2), (
        float(jnp.max(jnp.abs(probs - ref_probs))))
    assert jnp.allclose(value, ref_value, atol=2e-2, rtol=2e-2), (
        float(jnp.max(jnp.abs(value - ref_value))))
    assert jnp.allclose(jnp.sum(probs, axis=-1), 1.0, atol=5e-3)

    print("KERNEL_OK")
</pallas_src>

<mosaic_0001>
module attributes {stable_mosaic.version = 11 : i64} {
  func.func @_actor_critic_kernel(%arg0: i32, %arg1: memref<128x16xf32, #tpu.memory_space<vmem>>, %arg2: memref<16x160xbf16, #tpu.memory_space<vmem>>, %arg3: memref<1x160xf32, #tpu.memory_space<vmem>>, %arg4: memref<160x320xbf16, #tpu.memory_space<vmem>>, %arg5: memref<1x320xf32, #tpu.memory_space<vmem>>, %arg6: memref<320x160xbf16, #tpu.memory_space<vmem>>, %arg7: memref<1x160xf32, #tpu.memory_space<vmem>>, %arg8: memref<160x128xbf16, #tpu.memory_space<vmem>>, %arg9: memref<1x128xf32, #tpu.memory_space<vmem>>, %arg10: memref<16x160xbf16, #tpu.memory_space<vmem>>, %arg11: memref<1x160xf32, #tpu.memory_space<vmem>>, %arg12: memref<160x320xbf16, #tpu.memory_space<vmem>>, %arg13: memref<1x320xf32, #tpu.memory_space<vmem>>, %arg14: memref<320x160xbf16, #tpu.memory_space<vmem>>, %arg15: memref<1x160xf32, #tpu.memory_space<vmem>>, %arg16: memref<1x160xf32, #tpu.memory_space<vmem>>, %arg17: memref<1x1xf32, #tpu.memory_space<vmem>>, %arg18: memref<128x128xf32, #tpu.memory_space<vmem>>) attributes {dimension_semantics = [#tpu.dimension_semantics<parallel>], iteration_bounds = array<i64: 1>, scalar_prefetch = 0 : i64, scratch_operands = 0 : i64, tpu.core_type = #tpu.core_type<tc>, window_params = [{transform_indices = @transform_0, window_bounds = array<i64: 128, 16>}, {pipeline_mode = #tpu.pipeline_mode<synchronous>, transform_indices = @transform_1, window_bounds = array<i64: 16, 160>}, {pipeline_mode = #tpu.pipeline_mode<synchronous>, transform_indices = @transform_2, window_bounds = array<i64: 1, 160>}, {pipeline_mode = #tpu.pipeline_mode<synchronous>, transform_indices = @transform_3, window_bounds = array<i64: 160, 320>}, {pipeline_mode = #tpu.pipeline_mode<synchronous>, transform_indices = @transform_4, window_bounds = array<i64: 1, 320>}, {pipeline_mode = #tpu.pipeline_mode<synchronous>, transform_indices = @transform_5, window_bounds = array<i64: 320, 160>}, {pipeline_mode = #tpu.pipeline_mode<synchronous>, transform_indices = @transform_6, window_bounds = array<i64: 1, 160>}, {pipeline_mode = #tpu.pipeline_mode<synchronous>, transform_indices = @transform_7, window_bounds = array<i64: 160, 128>}, {pipeline_mode = #tpu.pipeline_mode<synchronous>, transform_indices = @transform_8, window_bounds = array<i64: 1, 128>}, {pipeline_mode = #tpu.pipeline_mode<synchronous>, transform_indices = @transform_9, window_bounds = array<i64: 16, 160>}, {pipeline_mode = #tpu.pipeline_mode<synchronous>, transform_indices = @transform_10, window_bounds = array<i64: 1, 160>}, {pipeline_mode = #tpu.pipeline_mode<synchronous>, transform_indices = @transform_11, window_bounds = array<i64: 160, 320>}, {pipeline_mode = #tpu.pipeline_mode<synchronous>, transform_indices = @transform_12, window_bounds = array<i64: 1, 320>}, {pipeline_mode = #tpu.pipeline_mode<synchronous>, transform_indices = @transform_13, window_bounds = array<i64: 320, 160>}, {pipeline_mode = #tpu.pipeline_mode<synchronous>, transform_indices = @transform_14, window_bounds = array<i64: 1, 160>}, {pipeline_mode = #tpu.pipeline_mode<synchronous>, transform_indices = @transform_15, window_bounds = array<i64: 1, 160>}, {pipeline_mode = #tpu.pipeline_mode<synchronous>, transform_indices = @transform_16, window_bounds = array<i64: 1, 1>}, {transform_indices = @transform_17, window_bounds = array<i64: 128, 128>}]} {
    %c0 = arith.constant 0 : index
    %c0_0 = arith.constant 0 : index
    %0 = vector.load %arg1[%c0, %c0_0] : memref<128x16xf32, #tpu.memory_space<vmem>>, vector<128x16xf32>
    %1 = arith.truncf %0 : vector<128x16xf32> to vector<128x16xbf16>
    %c0_1 = arith.constant 0 : index
    %c0_2 = arith.constant 0 : index
    %2 = vector.load %arg2[%c0_1, %c0_2] : memref<16x160xbf16, #tpu.memory_space<vmem>>, vector<16x160xbf16>
    %cst = arith.constant dense<0.000000e+00> : vector<128x160xf32>
    %3 = tpu.matmul %1, %2, %cst {dimension_numbers = #tpu.dot_dimension_numbers<[1], [0], [0], [1], [0, 0, 1, 1], [], []>} : vector<128x16xbf16>, vector<16x160xbf16>, vector<128x160xf32> -> vector<128x160xf32>
    %c0_3 = arith.constant 0 : index
    %c0_4 = arith.constant 0 : index
    %4 = vector.load %arg3[%c0_3, %c0_4] : memref<1x160xf32, #tpu.memory_space<vmem>>, vector<1x160xf32>
    %5 = vector.broadcast %4 : vector<1x160xf32> to vector<128x160xf32>
    %6 = arith.addf %3, %5 : vector<128x160xf32>
    %cst_5 = arith.constant 0.000000e+00 : f32
    %7 = vector.broadcast %cst_5 : f32 to vector<128x160xf32>
    %8 = arith.maximumf %6, %7 : vector<128x160xf32>
    %9 = arith.truncf %8 : vector<128x160xf32> to vector<128x160xbf16>
    %c0_6 = arith.constant 0 : index
    %c0_7 = arith.constant 0 : index
    %10 = vector.load %arg4[%c0_6, %c0_7] : memref<160x320xbf16, #tpu.memory_space<vmem>>, vector<160x320xbf16>
    %cst_8 = arith.constant dense<0.000000e+00> : vector<128x320xf32>
    %11 = tpu.matmul %9, %10, %cst_8 {dimension_numbers = #tpu.dot_dimension_numbers<[1], [0], [0], [1], [0, 0, 1, 1], [], []>} : vector<128x160xbf16>, vector<160x320xbf16>, vector<128x320xf32> -> vector<128x320xf32>
    %c0_9 = arith.constant 0 : index
    %c0_10 = arith.constant 0 : index
    %12 = vector.load %arg5[%c0_9, %c0_10] : memref<1x320xf32, #tpu.memory_space<vmem>>, vector<1x320xf32>
    %13 = vector.broadcast %12 : vector<1x320xf32> to vector<128x320xf32>
    %14 = arith.addf %11, %13 : vector<128x320xf32>
    %cst_11 = arith.constant 0.000000e+00 : f32
    %15 = vector.broadcast %cst_11 : f32 to vector<128x320xf32>
    %16 = arith.maximumf %14, %15 : vector<128x320xf32>
    %17 = arith.truncf %16 : vector<128x320xf32> to vector<128x320xbf16>
    %c0_12 = arith.constant 0 : index
    %c0_13 = arith.constant 0 : index
    %18 = vector.load %arg6[%c0_12, %c0_13] : memref<320x160xbf16, #tpu.memory_space<vmem>>, vector<320x160xbf16>
    %cst_14 = arith.constant dense<0.000000e+00> : vector<128x160xf32>
    %19 = tpu.matmul %17, %18, %cst_14 {dimension_numbers = #tpu.dot_dimension_numbers<[1], [0], [0], [1], [0, 0, 1, 1], [], []>} : vector<128x320xbf16>, vector<320x160xbf16>, vector<128x160xf32> -> vector<128x160xf32>
    %c0_15 = arith.constant 0 : index
    %c0_16 = arith.constant 0 : index
    %20 = vector.load %arg7[%c0_15, %c0_16] : memref<1x160xf32, #tpu.memory_space<vmem>>, vector<1x160xf32>
    %21 = vector.broadcast %20 : vector<1x160xf32> to vector<128x160xf32>
    %22 = arith.addf %19, %21 : vector<128x160xf32>
    %cst_17 = arith.constant 0.000000e+00 : f32
    %23 = vector.broadcast %cst_17 : f32 to vector<128x160xf32>
    %24 = arith.maximumf %22, %23 : vector<128x160xf32>
    %25 = arith.truncf %24 : vector<128x160xf32> to vector<128x160xbf16>
    %c0_18 = arith.constant 0 : index
    %c0_19 = arith.constant 0 : index
    %26 = vector.load %arg8[%c0_18, %c0_19] : memref<160x128xbf16, #tpu.memory_space<vmem>>, vector<160x128xbf16>
    %cst_20 = arith.constant dense<0.000000e+00> : vector<128x128xf32>
    %27 = tpu.matmul %25, %26, %cst_20 {dimension_numbers = #tpu.dot_dimension_numbers<[1], [0], [0], [1], [0, 0, 1, 1], [], []>} : vector<128x160xbf16>, vector<160x128xbf16>, vector<128x128xf32> -> vector<128x128xf32>
    %c0_21 = arith.constant 0 : index
    %c0_22 = arith.constant 0 : index
    %28 = vector.load %arg9[%c0_21, %c0_22] : memref<1x128xf32, #tpu.memory_space<vmem>>, vector<1x128xf32>
    %29 = vector.broadcast %28 : vector<1x128xf32> to vector<128x128xf32>
    %30 = arith.addf %27, %29 : vector<128x128xf32>
    %cst_23 = arith.constant dense<0xFF800000> : vector<128xf32>
    %31 = vector.multi_reduction <maximumf>, %30, %cst_23 [1] : vector<128x128xf32> to vector<128xf32>
    %32 = vector.shape_cast %31 : vector<128xf32> to vector<128x1xf32>
    %33 = vector.broadcast %32 : vector<128x1xf32> to vector<128x128xf32>
    %34 = arith.subf %30, %33 : vector<128x128xf32>
    %35 = math.exp %34 : vector<128x128xf32>
    %cst_24 = arith.constant dense<0.000000e+00> : vector<128xf32>
    %36 = vector.multi_reduction <add>, %35, %cst_24 [1] : vector<128x128xf32> to vector<128xf32>
    %37 = vector.shape_cast %36 : vector<128xf32> to vector<128x1xf32>
    %38 = tpu.reciprocal %37 {approx = true} : vector<128x1xf32> -> vector<128x1xf32>
    %39 = vector.broadcast %38 : vector<128x1xf32> to vector<128x128xf32>
    %40 = arith.mulf %35, %39 : vector<128x128xf32>
    %41 = arith.truncf %0 : vector<128x16xf32> to vector<128x16xbf16>
    %c0_25 = arith.constant 0 : index
    %c0_26 = arith.constant 0 : index
    %42 = vector.load %arg10[%c0_25, %c0_26] : memref<16x160xbf16, #tpu.memory_space<vmem>>, vector<16x160xbf16>
    %cst_27 = arith.constant dense<0.000000e+00> : vector<128x160xf32>
    %43 = tpu.matmul %41, %42, %cst_27 {dimension_numbers = #tpu.dot_dimension_numbers<[1], [0], [0], [1], [0, 0, 1, 1], [], []>} : vector<128x16xbf16>, vector<16x160xbf16>, vector<128x160xf32> -> vector<128x160xf32>
    %c0_28 = arith.constant 0 : index
    %c0_29 = arith.constant 0 : index
    %44 = vector.load %arg11[%c0_28, %c0_29] : memref<1x160xf32, #tpu.memory_space<vmem>>, vector<1x160xf32>
    %45 = vector.broadcast %44 : vector<1x160xf32> to vector<128x160xf32>
    %46 = arith.addf %43, %45 : vector<128x160xf32>
    %cst_30 = arith.constant 0.000000e+00 : f32
    %47 = vector.broadcast %cst_30 : f32 to vector<128x160xf32>
    %48 = arith.maximumf %46, %47 : vector<128x160xf32>
    %49 = arith.truncf %48 : vector<128x160xf32> to vector<128x160xbf16>
    %c0_31 = arith.constant 0 : index
    %c0_32 = arith.constant 0 : index
    %50 = vector.load %arg12[%c0_31, %c0_32] : memref<160x320xbf16, #tpu.memory_space<vmem>>, vector<160x320xbf16>
    %cst_33 = arith.constant dense<0.000000e+00> : vector<128x320xf32>
    %51 = tpu.matmul %49, %50, %cst_33 {dimension_numbers = #tpu.dot_dimension_numbers<[1], [0], [0], [1], [0, 0, 1, 1], [], []>} : vector<128x160xbf16>, vector<160x320xbf16>, vector<128x320xf32> -> vector<128x320xf32>
    %c0_34 = arith.constant 0 : index
    %c0_35 = arith.constant 0 : index
    %52 = vector.load %arg13[%c0_34, %c0_35] : memref<1x320xf32, #tpu.memory_space<vmem>>, vector<1x320xf32>
    %53 = vector.broadcast %52 : vector<1x320xf32> to vector<128x320xf32>
    %54 = arith.addf %51, %53 : vector<128x320xf32>
    %cst_36 = arith.constant 0.000000e+00 : f32
    %55 = vector.broadcast %cst_36 : f32 to vector<128x320xf32>
    %56 = arith.maximumf %54, %55 : vector<128x320xf32>
    %57 = arith.truncf %56 : vector<128x320xf32> to vector<128x320xbf16>
    %c0_37 = arith.constant 0 : index
    %c0_38 = arith.constant 0 : index
    %58 = vector.load %arg14[%c0_37, %c0_38] : memref<320x160xbf16, #tpu.memory_space<vmem>>, vector<320x160xbf16>
    %cst_39 = arith.constant dense<0.000000e+00> : vector<128x160xf32>
    %59 = tpu.matmul %57, %58, %cst_39 {dimension_numbers = #tpu.dot_dimension_numbers<[1], [0], [0], [1], [0, 0, 1, 1], [], []>} : vector<128x320xbf16>, vector<320x160xbf16>, vector<128x160xf32> -> vector<128x160xf32>
    %c0_40 = arith.constant 0 : index
    %c0_41 = arith.constant 0 : index
    %60 = vector.load %arg15[%c0_40, %c0_41] : memref<1x160xf32, #tpu.memory_space<vmem>>, vector<1x160xf32>
    %61 = vector.broadcast %60 : vector<1x160xf32> to vector<128x160xf32>
    %62 = arith.addf %59, %61 : vector<128x160xf32>
    %cst_42 = arith.constant 0.000000e+00 : f32
    %63 = vector.broadcast %cst_42 : f32 to vector<128x160xf32>
    %64 = arith.maximumf %62, %63 : vector<128x160xf32>
    %c0_43 = arith.constant 0 : index
    %c0_44 = arith.constant 0 : index
    %65 = vector.load %arg16[%c0_43, %c0_44] : memref<1x160xf32, #tpu.memory_space<vmem>>, vector<1x160xf32>
    %66 = vector.broadcast %65 : vector<1x160xf32> to vector<128x160xf32>
    %67 = arith.mulf %64, %66 : vector<128x160xf32>
    %cst_45 = arith.constant dense<0.000000e+00> : vector<128xf32>
    %68 = vector.multi_reduction <add>, %67, %cst_45 [1] : vector<128x160xf32> to vector<128xf32>
    %69 = vector.shape_cast %68 : vector<128xf32> to vector<128x1xf32>
    %c0_46 = arith.constant 0 : index
    %c0_47 = arith.constant 0 : index
    %70 = vector.load %arg17[%c0_46, %c0_47] : memref<1x1xf32, #tpu.memory_space<vmem>>, vector<1x1xf32>
    %71 = vector.broadcast %70 : vector<1x1xf32> to vector<128x1xf32>
    %72 = arith.addf %69, %71 : vector<128x1xf32>
    %73 = tpu.iota {dimensions = array<i32: 1>} : vector<128x128xi32>
    %c8_i32 = arith.constant 8 : i32
    %74 = vector.broadcast %c8_i32 : i32 to vector<128x128xi32>
    %75 = arith.cmpi eq, %73, %74 : vector<128x128xi32>
    %76 = vector.shape_cast %72 : vector<128x1xf32> to vector<128x1xf32>
    %77 = vector.broadcast %76 : vector<128x1xf32> to vector<128x128xf32>
    %78 = arith.select %75, %77, %40 : vector<128x128xi1>, vector<128x128xf32>
    %c0_48 = arith.constant 0 : index
    %c0_49 = arith.constant 0 : index
    %79 = vector.load %arg18[%c0_48, %c0_49] : memref<128x128xf32, #tpu.memory_space<vmem>>, vector<128x128xf32>
    tpu.vector_store %arg18[%c0_48, %c0_49], %78 {strides = array<i32>} : memref<128x128xf32, #tpu.memory_space<vmem>>, vector<128x128xf32>,
    return
  }
  func.func @transform_0(%arg0: i32) -> (i32, i32) {
    %c0_i32 = arith.constant 0 : i32
    %c0_i32_0 = arith.constant 0 : i32
    return %arg0, %c0_i32 : i32, i32
  }
  func.func @transform_1(%arg0: i32) -> (i32, i32) {
    %c0_i32 = arith.constant 0 : i32
    %c0_i32_0 = arith.constant 0 : i32
    %c0_i32_1 = arith.constant 0 : i32
    return %c0_i32, %c0_i32_0 : i32, i32
  }
  func.func @transform_2(%arg0: i32) -> (i32, i32) {
    %c0_i32 = arith.constant 0 : i32
    %c0_i32_0 = arith.constant 0 : i32
    %c0_i32_1 = arith.constant 0 : i32
    return %c0_i32, %c0_i32_0 : i32, i32
  }
  func.func @transform_3(%arg0: i32) -> (i32, i32) {
    %c0_i32 = arith.constant 0 : i32
    %c0_i32_0 = arith.constant 0 : i32
    %c0_i32_1 = arith.constant 0 : i32
    return %c0_i32, %c0_i32_0 : i32, i32
  }
  func.func @transform_4(%arg0: i32) -> (i32, i32) {
    %c0_i32 = arith.constant 0 : i32
    %c0_i32_0 = arith.constant 0 : i32
    %c0_i32_1 = arith.constant 0 : i32
    return %c0_i32, %c0_i32_0 : i32, i32
  }
  func.func @transform_5(%arg0: i32) -> (i32, i32) {
    %c0_i32 = arith.constant 0 : i32
    %c0_i32_0 = arith.constant 0 : i32
    %c0_i32_1 = arith.constant 0 : i32
    return %c0_i32, %c0_i32_0 : i32, i32
  }
  func.func @transform_6(%arg0: i32) -> (i32, i32) {
    %c0_i32 = arith.constant 0 : i32
    %c0_i32_0 = arith.constant 0 : i32
    %c0_i32_1 = arith.constant 0 : i32
    return %c0_i32, %c0_i32_0 : i32, i32
  }
  func.func @transform_7(%arg0: i32) -> (i32, i32) {
    %c0_i32 = arith.constant 0 : i32
    %c0_i32_0 = arith.constant 0 : i32
    %c0_i32_1 = arith.constant 0 : i32
    return %c0_i32, %c0_i32_0 : i32, i32
  }
  func.func @transform_8(%arg0: i32) -> (i32, i32) {
    %c0_i32 = arith.constant 0 : i32
    %c0_i32_0 = arith.constant 0 : i32
    %c0_i32_1 = arith.constant 0 : i32
    return %c0_i32, %c0_i32_0 : i32, i32
  }
  func.func @transform_9(%arg0: i32) -> (i32, i32) {
    %c0_i32 = arith.constant 0 : i32
    %c0_i32_0 = arith.constant 0 : i32
    %c0_i32_1 = arith.constant 0 : i32
    return %c0_i32, %c0_i32_0 : i32, i32
  }
  func.func @transform_10(%arg0: i32) -> (i32, i32) {
    %c0_i32 = arith.constant 0 : i32
    %c0_i32_0 = arith.constant 0 : i32
    %c0_i32_1 = arith.constant 0 : i32
    return %c0_i32, %c0_i32_0 : i32, i32
  }
  func.func @transform_11(%arg0: i32) -> (i32, i32) {
    %c0_i32 = arith.constant 0 : i32
    %c0_i32_0 = arith.constant 0 : i32
    %c0_i32_1 = arith.constant 0 : i32
    return %c0_i32, %c0_i32_0 : i32, i32
  }
  func.func @transform_12(%arg0: i32) -> (i32, i32) {
    %c0_i32 = arith.constant 0 : i32
    %c0_i32_0 = arith.constant 0 : i32
    %c0_i32_1 = arith.constant 0 : i32
    return %c0_i32, %c0_i32_0 : i32, i32
  }
  func.func @transform_13(%arg0: i32) -> (i32, i32) {
    %c0_i32 = arith.constant 0 : i32
    %c0_i32_0 = arith.constant 0 : i32
    %c0_i32_1 = arith.constant 0 : i32
    return %c0_i32, %c0_i32_0 : i32, i32
  }
  func.func @transform_14(%arg0: i32) -> (i32, i32) {
    %c0_i32 = arith.constant 0 : i32
    %c0_i32_0 = arith.constant 0 : i32
    %c0_i32_1 = arith.constant 0 : i32
    return %c0_i32, %c0_i32_0 : i32, i32
  }
  func.func @transform_15(%arg0: i32) -> (i32, i32) {
    %c0_i32 = arith.constant 0 : i32
    %c0_i32_0 = arith.constant 0 : i32
    %c0_i32_1 = arith.constant 0 : i32
    return %c0_i32, %c0_i32_0 : i32, i32
  }
  func.func @transform_16(%arg0: i32) -> (i32, i32) {
    %c0_i32 = arith.constant 0 : i32
    %c0_i32_0 = arith.constant 0 : i32
    %c0_i32_1 = arith.constant 0 : i32
    return %c0_i32, %c0_i32_0 : i32, i32
  }
  func.func @transform_17(%arg0: i32) -> (i32, i32) {
    %c0_i32 = arith.constant 0 : i32
    %c0_i32_0 = arith.constant 0 : i32
    return %arg0, %c0_i32 : i32, i32
  }
}

</mosaic_0001>

<llo_original>
// kernel: tpu_custom_call.1
$region0: #{tpu_custom_call.1}
  #allocation0 [shape = 'u32[]', space=smem, size = 0x4, offset = 0x4, fixed_abs, tag = 'smem constant byte address 0x4 - core index']
  #allocation1 [shape = 'u32[144,128]{1,0:T(1,128)}', space=vmem, size = 0x12000, scoped, tag = 'internal scratch']
  #allocation2 [shape = 'f32[1,1]{1,0:T(1,128)S(1)}', space=vmem, size = 0x200, scoped, tag = 'scoped memory for tpu_custom_call.1']
  %s0 = inlined_call_operand.vmem [shape: f32[128,16], index: 0, kind: input, shape index: {}]
  %s1 = inlined_call_operand.vmem [shape: bf16[16,160], index: 1, kind: input, shape index: {}]
  %s2 = inlined_call_operand.vmem [shape: f32[1,160], index: 2, kind: input, shape index: {}]
  %s3 = inlined_call_operand.vmem [shape: bf16[160,320], index: 3, kind: input, shape index: {}]
  %s4 = inlined_call_operand.vmem [shape: f32[1,320], index: 4, kind: input, shape index: {}]
  %s5 = inlined_call_operand.vmem [shape: bf16[320,160], index: 5, kind: input, shape index: {}]
  %s6 = inlined_call_operand.vmem [shape: f32[1,160], index: 6, kind: input, shape index: {}]
  %s7 = inlined_call_operand.vmem [shape: bf16[160,128], index: 7, kind: input, shape index: {}]
  %s8 = inlined_call_operand.vmem [shape: f32[1,128], index: 8, kind: input, shape index: {}]
  %s9 = inlined_call_operand.vmem [shape: bf16[16,160], index: 9, kind: input, shape index: {}]
  %s10 = inlined_call_operand.vmem [shape: f32[1,160], index: 10, kind: input, shape index: {}]
  %s11 = inlined_call_operand.vmem [shape: bf16[160,320], index: 11, kind: input, shape index: {}]
  %s12 = inlined_call_operand.vmem [shape: f32[1,320], index: 12, kind: input, shape index: {}]
  %s13 = inlined_call_operand.vmem [shape: bf16[320,160], index: 13, kind: input, shape index: {}]
  %s14 = inlined_call_operand.vmem [shape: f32[1,160], index: 14, kind: input, shape index: {}]
  %s15 = inlined_call_operand.vmem [shape: f32[1,160], index: 15, kind: input, shape index: {}]
  %s16 = inlined_call_operand.<no memory space> [shape: f32[1,1], index: 16, kind: input, shape index: {}]
  %s17 = inlined_call_operand.hbm [shape: f32[128,128], index: 17, kind: output, shape index: {}]
  %s18 = sld [smem:[#allocation0]]
  $region78: #{tpu_custom_call.1} parent=0
    _
  %s20 = ssub.s32 1, %s18
  %s21 = scalar_select 0, %s20, %s18
  %v22 = vstv %s16
  %23 = vst [vmem:[#allocation2] sm:$0x1] %v22
  $region1: #{tpu_custom_call.1} parent=0
    #allocation3 [shape = 'u8[65536]{0}', space=vmem, size = 0x10000, scoped, tag = 'output window, operand 0, single buffered']
    #allocation4 [shape = 's32[1]{0}', space=sflag, size = 0x4, scoped, tag = 'scoped memory for tpu_custom_call.1']
    %24 = vsyncpa [#allocation4], 0
    // Predicated region
    $region2: #{tpu_custom_call.1} parent=1 // pred_check
      _
    $region3: #{tpu_custom_call.1} parent=1 // pred_check_branch
      %26 = sbr.rel (0) target = $region5
    $region4: #{tpu_custom_call.1} parent=1 // pred_region
      _
    $region5: #{tpu_custom_call.1} parent=1 // pred_fallthru
      _
    // Predicated region
    $region6: #{tpu_custom_call.1} parent=1 // pred_check
      _
    $region7: #{tpu_custom_call.1} parent=1 // pred_check_branch
      %28 = sbr.rel (0) target = $region9
    $region8: #{tpu_custom_call.1} parent=1 // pred_region
      _
    $region9: #{tpu_custom_call.1} parent=1 // pred_fallthru
      _
    // Predicated region
    $region10: #{tpu_custom_call.1} parent=1 // pred_check
      _
    $region11: #{tpu_custom_call.1} parent=1 // pred_check_branch
      %30 = sbr.rel (0) target = $region13
    $region12: #{tpu_custom_call.1} parent=1 // pred_region
      _
    $region13: #{tpu_custom_call.1} parent=1 // pred_fallthru
      _
    // Predicated region
    $region14: #{tpu_custom_call.1} parent=1 // pred_check
      _
    $region15: #{tpu_custom_call.1} parent=1 // pred_check_branch
      %32 = sbr.rel (0) target = $region17
    $region16: #{tpu_custom_call.1} parent=1 // pred_region
      _
    $region17: #{tpu_custom_call.1} parent=1 // pred_fallthru
      _
    // Predicated region
    $region18: #{tpu_custom_call.1} parent=1 // pred_check
      _
    $region19: #{tpu_custom_call.1} parent=1 // pred_check_branch
      %34 = sbr.rel (0) target = $region21
    $region20: #{tpu_custom_call.1} parent=1 // pred_region
      _
    $region21: #{tpu_custom_call.1} parent=1 // pred_fallthru
      _
    // Predicated region
    $region22: #{tpu_custom_call.1} parent=1 // pred_check
      _
    $region23: #{tpu_custom_call.1} parent=1 // pred_check_branch
      %36 = sbr.rel (0) target = $region25
    $region24: #{tpu_custom_call.1} parent=1 // pred_region
      _
    $region25: #{tpu_custom_call.1} parent=1 // pred_fallthru
      _
    // Predicated region
    $region26: #{tpu_custom_call.1} parent=1 // pred_check
      _
    $region27: #{tpu_custom_call.1} parent=1 // pred_check_branch
      %38 = sbr.rel (0) target = $region29
    $region28: #{tpu_custom_call.1} parent=1 // pred_region
      _
    $region29: #{tpu_custom_call.1} parent=1 // pred_fallthru
      _
    // Predicated region
    $region30: #{tpu_custom_call.1} parent=1 // pred_check
      _
    $region31: #{tpu_custom_call.1} parent=1 // pred_check_branch
      %40 = sbr.rel (0) target = $region33
    $region32: #{tpu_custom_call.1} parent=1 // pred_region
      _
    $region33: #{tpu_custom_call.1} parent=1 // pred_fallthru
      _
    // Predicated region
    $region34: #{tpu_custom_call.1} parent=1 // pred_check
      _
    $region35: #{tpu_custom_call.1} parent=1 // pred_check_branch
      %42 = sbr.rel (0) target = $region37
    $region36: #{tpu_custom_call.1} parent=1 // pred_region
      _
    $region37: #{tpu_custom_call.1} parent=1 // pred_fallthru
      _
    // Predicated region
    $region38: #{tpu_custom_call.1} parent=1 // pred_check
      _
    $region39: #{tpu_custom_call.1} parent=1 // pred_check_branch
      %44 = sbr.rel (0) target = $region41
    $region40: #{tpu_custom_call.1} parent=1 // pred_region
      _
    $region41: #{tpu_custom_call.1} parent=1 // pred_fallthru
      _
    // Predicated region
    $region42: #{tpu_custom_call.1} parent=1 // pred_check
      _
    $region43: #{tpu_custom_call.1} parent=1 // pred_check_branch
      %46 = sbr.rel (0) target = $region45
    $region44: #{tpu_custom_call.1} parent=1 // pred_region
      _
    $region45: #{tpu_custom_call.1} parent=1 // pred_fallthru
      _
    // Predicated region
    $region46: #{tpu_custom_call.1} parent=1 // pred_check
      _
    $region47: #{tpu_custom_call.1} parent=1 // pred_check_branch
      %48 = sbr.rel (0) target = $region49
    $region48: #{tpu_custom_call.1} parent=1 // pred_region
      _
    $region49: #{tpu_custom_call.1} parent=1 // pred_fallthru
      _
    // Predicated region
    $region50: #{tpu_custom_call.1} parent=1 // pred_check
      _
    $region51: #{tpu_custom_call.1} parent=1 // pred_check_branch
      %50 = sbr.rel (0) target = $region53
    $region52: #{tpu_custom_call.1} parent=1 // pred_region
      _
    $region53: #{tpu_custom_call.1} parent=1 // pred_fallthru
      _
    // Predicated region
    $region54: #{tpu_custom_call.1} parent=1 // pred_check
      _
    $region55: #{tpu_custom_call.1} parent=1 // pred_check_branch
      %52 = sbr.rel (0) target = $region57
    $region56: #{tpu_custom_call.1} parent=1 // pred_region
      _
    $region57: #{tpu_custom_call.1} parent=1 // pred_fallthru
      _
    // Predicated region
    $region58: #{tpu_custom_call.1} parent=1 // pred_check
      _
    $region59: #{tpu_custom_call.1} parent=1 // pred_check_branch
      %54 = sbr.rel (0) target = $region61
    $region60: #{tpu_custom_call.1} parent=1 // pred_region
      _
    $region61: #{tpu_custom_call.1} parent=1 // pred_fallthru
      _
    // Predicated region
    $region62: #{tpu_custom_call.1} parent=1 // pred_check
      _
    $region63: #{tpu_custom_call.1} parent=1 // pred_check_branch
      %56 = sbr.rel (0) target = $region65
    $region64: #{tpu_custom_call.1} parent=1 // pred_region
      _
    $region65: #{tpu_custom_call.1} parent=1 // pred_fallthru
      _
    // Predicated region
    $region66: #{tpu_custom_call.1} parent=1 // pred_check
      _
    $region67: #{tpu_custom_call.1} parent=1 // pred_check_branch
      %58 = sbr.rel (0) target = $region69
    $region68: #{tpu_custom_call.1} parent=1 // pred_region
      _
    $region69: #{tpu_custom_call.1} parent=1 // pred_fallthru
      _
    %v60 = vld [vmem:[%s0] sm:$0xff]
    %v61 = vld [vmem:[%s0 + $0x8] sm:$0xff]
    %v62 = vld [vmem:[%s0 + $0x10] sm:$0xff]
    %v63 = vld [vmem:[%s0 + $0x18] sm:$0xff]
    %v64 = vld [vmem:[%s0 + $0x20] sm:$0xff]
    %v65 = vld [vmem:[%s0 + $0x28] sm:$0xff]
    %v66 = vld [vmem:[%s0 + $0x30] sm:$0xff]
    %v67 = vld [vmem:[%s0 + $0x38] sm:$0xff]
    %v68 = vld [vmem:[%s0 + $0x40] sm:$0xff]
    %v69 = vld [vmem:[%s0 + $0x48] sm:$0xff]
    %v70 = vld [vmem:[%s0 + $0x50] sm:$0xff]
    %v71 = vld [vmem:[%s0 + $0x58] sm:$0xff]
    %v72 = vld [vmem:[%s0 + $0x60] sm:$0xff]
    %v73 = vld [vmem:[%s0 + $0x68] sm:$0xff]
    %v74 = vld [vmem:[%s0 + $0x70] sm:$0xff]
    %v75 = vld [vmem:[%s0 + $0x78] sm:$0xff]
    %v76 = vpack.c.bf16 %v61, %v60
    %v77 = vpack.c.bf16 %v63, %v62
    %v78 = vpack.c.bf16 %v65, %v64
    %v79 = vpack.c.bf16 %v67, %v66
    %v80 = vpack.c.bf16 %v69, %v68
    %v81 = vpack.c.bf16 %v71, %v70
    %v82 = vpack.c.bf16 %v73, %v72
    %v83 = vpack.c.bf16 %v75, %v74
    %v84 = vld [vmem:[%s1] sm:$0xff]
    %v85 = vld [vmem:[%s1 + $0x8] sm:$0xff]
    %v86 = vld [vmem:[%s2] sm:$0x3]
    %v88 = vlaneseq
    %v89 = vshrl.u32 %v88, 7
    %v90 = vsub.s32 0, %v89
    %v91 = vrot.slane %v86, %v90
    %v92 = vlaneseq
    %v93 = vshrl.u32 %v92, 7
    %v94 = vsub.s32 1, %v93
    %v95 = vrot.slane %v86, %v94
    %v100 = vunpack.c.l.b16 %v84
    %v101 = vunpack.c.h.b16 %v84
    %v102 = vunpack.c.l.b16 %v85
    %v103 = vunpack.c.h.b16 %v85
    %v104 = vpack.c.b16 %v102, %v100
    %v105 = vpack.c.b16 %v103, %v101
    %vm108 = vcmask 130048
    %v110 = vsel %vm108, %v76, 0
    %v113 = vsel %vm108, %v77, 0
    %v116 = vsel %vm108, %v78, 0
    %v119 = vsel %vm108, %v79, 0
    %v122 = vsel %vm108, %v80, 0
    %v125 = vsel %vm108, %v81, 0
    %v128 = vsel %vm108, %v82, 0
    %v131 = vsel %vm108, %v83, 0
    %133 = vmatprep.subr.bf16.mxu0 0
    %134 = vmatpush1.bf16.msra.mxu0 0
    %135 = vmatprep.subr.bf16.mxu0 0
    %136 = vmatpush1.bf16.msra.mxu0 0
    %137 = vmatprep.subr.bf16.mxu0 0
    %138 = vmatpush1.bf16.msra.mxu0 0
    %139 = vmatprep.subr.bf16.mxu0 0
    %140 = vmatpush1.bf16.msra.mxu0 0
    %141 = vmatprep.subr.bf16.mxu0 0
    %142 = vmatpush1.bf16.msra.mxu0 0
    %143 = vmatprep.subr.bf16.mxu0 0
    %144 = vmatpush1.bf16.msra.mxu0 0
    %145 = vmatprep.subr.bf16.mxu0 0
    %146 = vmatpush1.bf16.msra.mxu0 0
    %147 = vmatprep.subr.bf16.mxu0 %v105
    %148 = vmatpush1.bf16.msra.mxu0 %v104
    %149 = vmatprep.subr.bf16.mxu0 0
    %150 = vmatpush2.bf16.msra.mxu0 0
    %151 = vmatprep.subr.bf16.mxu0 0
    %152 = vmatpush2.bf16.msra.mxu0 0
    %153 = vmatprep.subr.bf16.mxu0 0
    %154 = vmatpush2.bf16.msra.mxu0 0
    %155 = vmatprep.subr.bf16.mxu0 0
    %156 = vmatpush2.bf16.msra.mxu0 0
    %157 = vmatprep.subr.bf16.mxu0 0
    %158 = vmatpush2.bf16.msra.mxu0 0
    %159 = vmatprep.subr.bf16.mxu0 0
    %160 = vmatpush2.bf16.msra.mxu0 0
    %161 = vmatprep.subr.bf16.mxu0 0
    %162 = vmatpush2.bf16.msra.mxu0 0
    %163 = vmatprep.subr.bf16.mxu0 0
    %164 = vmatpush2.bf16.msra.mxu0 0
    %165 = vmatprep.mubr.bf16.mxu0 0
    %166 = vmatmul.mubr.bf16.gmra.mxu0 %v110
    %v167 = vpop.f32.mrf.mxu0
    %v168 = vadd.f32 %v91, %v167
    %v169 = vpop.f32.mrf.mxu0
    %v170 = vadd.f32 %v95, %v169
    %v171 = vpop.f32.mrf.mxu0
    %v172 = vadd.f32 %v91, %v171
    %v173 = vpop.f32.mrf.mxu0
    %v174 = vadd.f32 %v95, %v173
    %175 = vmatprep.mubr.bf16.mxu0 0
    %176 = vmatmul.mubr.bf16.gmra.mxu0 %v113
    %v177 = vpop.f32.mrf.mxu0
    %v178 = vadd.f32 %v91, %v177
    %v179 = vpop.f32.mrf.mxu0
    %v180 = vadd.f32 %v95, %v179
    %v181 = vpop.f32.mrf.mxu0
    %v182 = vadd.f32 %v91, %v181
    %v183 = vpop.f32.mrf.mxu0
    %v184 = vadd.f32 %v95, %v183
    %185 = vmatprep.mubr.bf16.mxu0 0
    %186 = vmatmul.mubr.bf16.gmra.mxu0 %v116
    %v187 = vpop.f32.mrf.mxu0
    %v188 = vadd.f32 %v91, %v187
    %v189 = vpop.f32.mrf.mxu0
    %v190 = vadd.f32 %v95, %v189
    %v191 = vpop.f32.mrf.mxu0
    %v192 = vadd.f32 %v91, %v191
    %v193 = vpop.f32.mrf.mxu0
    %v194 = vadd.f32 %v95, %v193
    %195 = vmatprep.mubr.bf16.mxu0 0
    %196 = vmatmul.mubr.bf16.gmra.mxu0 %v119
    %v197 = vpop.f32.mrf.mxu0
    %v198 = vadd.f32 %v91, %v197
    %v199 = vpop.f32.mrf.mxu0
    %v200 = vadd.f32 %v95, %v199
    %v201 = vpop.f32.mrf.mxu0
    %v202 = vadd.f32 %v91, %v201
    %v203 = vpop.f32.mrf.mxu0
    %v204 = vadd.f32 %v95, %v203
    %205 = vmatprep.mubr.bf16.mxu0 0
    %206 = vmatmul.mubr.bf16.gmra.mxu0 %v122
    %v207 = vpop.f32.mrf.mxu0
    %v208 = vadd.f32 %v91, %v207
    %v209 = vpop.f32.mrf.mxu0
    %v210 = vadd.f32 %v95, %v209
    %v211 = vpop.f32.mrf.mxu0
    %v212 = vadd.f32 %v91, %v211
    %v213 = vpop.f32.mrf.mxu0
    %v214 = vadd.f32 %v95, %v213
    %215 = vmatprep.mubr.bf16.mxu0 0
    %216 = vmatmul.mubr.bf16.gmra.mxu0 %v125
    %v217 = vpop.f32.mrf.mxu0
    %v218 = vadd.f32 %v91, %v217
    %v219 = vpop.f32.mrf.mxu0
    %v220 = vadd.f32 %v95, %v219
    %v221 = vpop.f32.mrf.mxu0
    %v222 = vadd.f32 %v91, %v221
    %v223 = vpop.f32.mrf.mxu0
    %v224 = vadd.f32 %v95, %v223
    %225 = vmatprep.mubr.bf16.mxu0 0
    %226 = vmatmul.mubr.bf16.gmra.mxu0 %v128
    %v227 = vpop.f32.mrf.mxu0
    %v228 = vadd.f32 %v91, %v227
    %v229 = vpop.f32.mrf.mxu0
    %v230 = vadd.f32 %v95, %v229
    %v231 = vpop.f32.mrf.mxu0
    %v232 = vadd.f32 %v91, %v231
    %v233 = vpop.f32.mrf.mxu0
    %v234 = vadd.f32 %v95, %v233
    %235 = vmatprep.mubr.bf16.mxu0 0
    %236 = vmatmul.mubr.bf16.gmra.mxu0 %v131
    %v237 = vpop.f32.mrf.mxu0
    %v238 = vadd.f32 %v91, %v237
    %v239 = vpop.f32.mrf.mxu0
    %v240 = vadd.f32 %v95, %v239
    %v241 = vpop.f32.mrf.mxu0
    %v242 = vadd.f32 %v91, %v241
    %v243 = vpop.f32.mrf.mxu0
    %v244 = vadd.f32 %v95, %v243
    %245 = vdwg.mxu0
    %v246 = vmax.f32 %v168, 0.0
    %v247 = vmax.f32 %v170, 0.0
    %v248 = vmax.f32 %v172, 0.0
    %v249 = vmax.f32 %v174, 0.0
    %v250 = vmax.f32 %v178, 0.0
    %v251 = vmax.f32 %v180, 0.0
    %v252 = vmax.f32 %v182, 0.0
    %v253 = vmax.f32 %v184, 0.0
    %v254 = vmax.f32 %v188, 0.0
    %v255 = vmax.f32 %v190, 0.0
    %v256 = vmax.f32 %v192, 0.0
    %v257 = vmax.f32 %v194, 0.0
    %v258 = vmax.f32 %v198, 0.0
    %v259 = vmax.f32 %v200, 0.0
    %v260 = vmax.f32 %v202, 0.0
    %v261 = vmax.f32 %v204, 0.0
    %v262 = vmax.f32 %v208, 0.0
    %v263 = vmax.f32 %v210, 0.0
    %v264 = vmax.f32 %v212, 0.0
    %v265 = vmax.f32 %v214, 0.0
    %v266 = vmax.f32 %v218, 0.0
    %v267 = vmax.f32 %v220, 0.0
    %v268 = vmax.f32 %v222, 0.0
    %v269 = vmax.f32 %v224, 0.0
    %v270 = vmax.f32 %v228, 0.0
    %v271 = vmax.f32 %v230, 0.0
    %v272 = vmax.f32 %v232, 0.0
    %v273 = vmax.f32 %v234, 0.0
    %v274 = vmax.f32 %v238, 0.0
    %v275 = vmax.f32 %v240, 0.0
    %v276 = vmax.f32 %v242, 0.0
    %v277 = vmax.f32 %v244, 0.0
    %v278 = vpack.c.bf16 %v248, %v246
    %v279 = vpack.c.bf16 %v249, %v247
    %v280 = vpack.c.bf16 %v252, %v250
    %v281 = vpack.c.bf16 %v253, %v251
    %v282 = vpack.c.bf16 %v256, %v254
    %v283 = vpack.c.bf16 %v257, %v255
    %v284 = vpack.c.bf16 %v260, %v258
    %v285 = vpack.c.bf16 %v261, %v259
    %v286 = vpack.c.bf16 %v264, %v262
    %v287 = vpack.c.bf16 %v265, %v263
    %v288 = vpack.c.bf16 %v268, %v266
    %v289 = vpack.c.bf16 %v269, %v267
    %v290 = vpack.c.bf16 %v272, %v270
    %v291 = vpack.c.bf16 %v273, %v271
    %v292 = vpack.c.bf16 %v276, %v274
    %v293 = vpack.c.bf16 %v277, %v275
    %v294 = vld [vmem:[%s3] sm:$0xff]
    %v295 = vld [vmem:[%s3 + $0x8] sm:$0xf]
    %v296 = vld [vmem:[%s3 + $0xc] sm:$0xff]
    %v297 = vld [vmem:[%s3 + $0x14] sm:$0xf]
    %v298 = vld [vmem:[%s3 + $0x18] sm:$0xff]
    %v299 = vld [vmem:[%s3 + $0x20] sm:$0xf]
    %v300 = vld [vmem:[%s3 + $0x24] sm:$0xff]
    %v301 = vld [vmem:[%s3 + $0x2c] sm:$0xf]
    %v302 = vld [vmem:[%s3 + $0x30] sm:$0xff]
    %v303 = vld [vmem:[%s3 + $0x38] sm:$0xf]
    %v304 = vld [vmem:[%s3 + $0x3c] sm:$0xff]
    %v305 = vld [vmem:[%s3 + $0x44] sm:$0xf]
    %v306 = vld [vmem:[%s3 + $0x48] sm:$0xff]
    %v307 = vld [vmem:[%s3 + $0x50] sm:$0xf]
    %v308 = vld [vmem:[%s3 + $0x54] sm:$0xff]
    %v309 = vld [vmem:[%s3 + $0x5c] sm:$0xf]
    %v310 = vld [vmem:[%s3 + $0x60] sm:$0xff]
    %v311 = vld [vmem:[%s3 + $0x68] sm:$0xf]
    %v312 = vld [vmem:[%s3 + $0x6c] sm:$0xff]
    %v313 = vld [vmem:[%s3 + $0x74] sm:$0xf]
    %v314 = vld [vmem:[%s3 + $0x78] sm:$0xff]
    %v315 = vld [vmem:[%s3 + $0x80] sm:$0xf]
    %v316 = vld [vmem:[%s3 + $0x84] sm:$0xff]
    %v317 = vld [vmem:[%s3 + $0x8c] sm:$0xf]
    %v318 = vld [vmem:[%s3 + $0x90] sm:$0xff]
    %v319 = vld [vmem:[%s3 + $0x98] sm:$0xf]
    %v320 = vld [vmem:[%s3 + $0x9c] sm:$0xff]
    %v321 = vld [vmem:[%s3 + $0xa4] sm:$0xf]
    %v322 = vld [vmem:[%s3 + $0xa8] sm:$0xff]
    %v323 = vld [vmem:[%s3 + $0xb0] sm:$0xf]
    %v324 = vld [vmem:[%s3 + $0xb4] sm:$0xff]
    %v325 = vld [vmem:[%s3 + $0xbc] sm:$0xf]
    %v326 = vld [vmem:[%s3 + $0xc0] sm:$0xff]
    %v327 = vld [vmem:[%s3 + $0xc8] sm:$0xf]
    %v328 = vld [vmem:[%s3 + $0xcc] sm:$0xff]
    %v329 = vld [vmem:[%s3 + $0xd4] sm:$0xf]
    %v330 = vld [vmem:[%s3 + $0xd8] sm:$0xff]
    %v331 = vld [vmem:[%s3 + $0xe0] sm:$0xf]
    %v332 = vld [vmem:[%s3 + $0xe4] sm:$0xff]
    %v333 = vld [vmem:[%s3 + $0xec] sm:$0xf]
    %v334 = vld [vmem:[%s4] sm:$0x7]
    %v336 = vlaneseq
    %v337 = vshrl.u32 %v336, 7
    %v338 = vsub.s32 0, %v337
    %v339 = vrot.slane %v334, %v338
    %v340 = vlaneseq
    %v341 = vshrl.u32 %v340, 7
    %v342 = vsub.s32 1, %v341
    %v343 = vrot.slane %v334, %v342
    %v344 = vlaneseq
    %v345 = vshrl.u32 %v344, 7
    %v346 = vsub.s32 2, %v345
    %v347 = vrot.slane %v334, %v346
    %v391 = vunpack.c.l.b16 %v294
    %v392 = vunpack.c.h.b16 %v294
    %v393 = vunpack.c.l.b16 %v295
    %v394 = vunpack.c.l.b16 %v296
    %v395 = vunpack.c.h.b16 %v296
    %v396 = vunpack.c.l.b16 %v297
    %v397 = vunpack.c.l.b16 %v298
    %v398 = vunpack.c.h.b16 %v298
    %v399 = vunpack.c.l.b16 %v299
    %v400 = vunpack.c.l.b16 %v300
    %v401 = vunpack.c.h.b16 %v300
    %v402 = vunpack.c.l.b16 %v301
    %v403 = vunpack.c.l.b16 %v302
    %v404 = vunpack.c.h.b16 %v302
    %v405 = vunpack.c.l.b16 %v303
    %v406 = vunpack.c.l.b16 %v304
    %v407 = vunpack.c.h.b16 %v304
    %v408 = vunpack.c.l.b16 %v305
    %v409 = vunpack.c.l.b16 %v306
    %v410 = vunpack.c.h.b16 %v306
    %v411 = vunpack.c.l.b16 %v307
    %v412 = vunpack.c.l.b16 %v308
    %v413 = vunpack.c.h.b16 %v308
    %v414 = vunpack.c.l.b16 %v309
    %v415 = vunpack.c.l.b16 %v310
    %v416 = vunpack.c.h.b16 %v310
    %v417 = vunpack.c.l.b16 %v311
    %v418 = vunpack.c.l.b16 %v312
    %v419 = vunpack.c.h.b16 %v312
    %v420 = vunpack.c.l.b16 %v313
    %v421 = vunpack.c.l.b16 %v314
    %v422 = vunpack.c.h.b16 %v314
    %v423 = vunpack.c.l.b16 %v315
    %v424 = vunpack.c.l.b16 %v316
    %v425 = vunpack.c.h.b16 %v316
    %v426 = vunpack.c.l.b16 %v317
    %v427 = vunpack.c.l.b16 %v318
    %v428 = vunpack.c.h.b16 %v318
    %v429 = vunpack.c.l.b16 %v319
    %v430 = vunpack.c.l.b16 %v320
    %v431 = vunpack.c.h.b16 %v320
    %v432 = vunpack.c.l.b16 %v321
    %v433 = vunpack.c.l.b16 %v322
    %v434 = vunpack.c.h.b16 %v322
    %v435 = vunpack.c.l.b16 %v323
    %v436 = vunpack.c.l.b16 %v324
    %v437 = vunpack.c.h.b16 %v324
    %v438 = vunpack.c.l.b16 %v325
    %v439 = vunpack.c.l.b16 %v326
    %v440 = vunpack.c.h.b16 %v326
    %v441 = vunpack.c.l.b16 %v327
    %v442 = vunpack.c.l.b16 %v328
    %v443 = vunpack.c.h.b16 %v328
    %v444 = vunpack.c.l.b16 %v329
    %v445 = vunpack.c.l.b16 %v330
    %v446 = vunpack.c.h.b16 %v330
    %v447 = vunpack.c.l.b16 %v331
    %v448 = vunpack.c.l.b16 %v332
    %v449 = vunpack.c.h.b16 %v332
    %v450 = vunpack.c.l.b16 %v333
    %v451 = vpack.c.b16 %v394, %v391
    %v452 = vpack.c.b16 %v395, %v392
    %v453 = vpack.c.b16 %v396, %v393
    %v454 = vpack.c.b16 %v400, %v397
    %v455 = vpack.c.b16 %v401, %v398
    %v456 = vpack.c.b16 %v402, %v399
    %v457 = vpack.c.b16 %v406, %v403
    %v458 = vpack.c.b16 %v407, %v404
    %v459 = vpack.c.b16 %v408, %v405
    %v460 = vpack.c.b16 %v412, %v409
    %v461 = vpack.c.b16 %v413, %v410
    %v462 = vpack.c.b16 %v414, %v411
    %v463 = vpack.c.b16 %v418, %v415
    %v464 = vpack.c.b16 %v419, %v416
    %v465 = vpack.c.b16 %v420, %v417
    %v466 = vpack.c.b16 %v424, %v421
    %v467 = vpack.c.b16 %v425, %v422
    %v468 = vpack.c.b16 %v426, %v423
    %v469 = vpack.c.b16 %v430, %v427
    %v470 = vpack.c.b16 %v431, %v428
    %v471 = vpack.c.b16 %v432, %v429
    %v472 = vpack.c.b16 %v436, %v433
    %v473 = vpack.c.b16 %v437, %v434
    %v474 = vpack.c.b16 %v438, %v435
    %v475 = vpack.c.b16 %v442, %v439
    %v476 = vpack.c.b16 %v443, %v440
    %v477 = vpack.c.b16 %v444, %v441
    %v478 = vpack.c.b16 %v448, %v445
    %v479 = vpack.c.b16 %v449, %v446
    %v480 = vpack.c.b16 %v450, %v447
    %vm511 = vcmask 261120
    %v513 = vsel %vm511, %v279, 0
    %v516 = vsel %vm511, %v281, 0
    %v519 = vsel %vm511, %v283, 0
    %v522 = vsel %vm511, %v285, 0
    %v525 = vsel %vm511, %v287, 0
    %v528 = vsel %vm511, %v289, 0
    %v531 = vsel %vm511, %v291, 0
    %v534 = vsel %vm511, %v293, 0
    %536 = vmatprep.subr.bf16.mxu0 %v473
    %537 = vmatpush1.bf16.msra.mxu0 %v472
    %538 = vmatprep.subr.bf16.mxu0 %v470
    %539 = vmatpush1.bf16.msra.mxu0 %v469
    %540 = vmatprep.subr.bf16.mxu0 %v467
    %541 = vmatpush1.bf16.msra.mxu0 %v466
    %542 = vmatprep.subr.bf16.mxu0 %v464
    %543 = vmatpush1.bf16.msra.mxu0 %v463
    %544 = vmatprep.subr.bf16.mxu0 %v461
    %545 = vmatpush1.bf16.msra.mxu0 %v460
    %546 = vmatprep.subr.bf16.mxu0 %v458
    %547 = vmatpush1.bf16.msra.mxu0 %v457
    %548 = vmatprep.subr.bf16.mxu0 %v455
    %549 = vmatpush1.bf16.msra.mxu0 %v454
    %550 = vmatprep.subr.bf16.mxu0 %v452
    %551 = vmatpush1.bf16.msra.mxu0 %v451
    %552 = vmatprep.subr.bf16.mxu0 0
    %553 = vmatpush2.bf16.msra.mxu0 0
    %554 = vmatprep.subr.bf16.mxu0 0
    %555 = vmatpush2.bf16.msra.mxu0 0
    %556 = vmatprep.subr.bf16.mxu0 0
    %557 = vmatpush2.bf16.msra.mxu0 0
    %558 = vmatprep.subr.bf16.mxu0 0
    %559 = vmatpush2.bf16.msra.mxu0 0
    %560 = vmatprep.subr.bf16.mxu0 0
    %561 = vmatpush2.bf16.msra.mxu0 0
    %562 = vmatprep.subr.bf16.mxu0 0
    %563 = vmatpush2.bf16.msra.mxu0 0
    %564 = vmatprep.subr.bf16.mxu0 %v479
    %565 = vmatpush2.bf16.msra.mxu0 %v478
    %566 = vmatprep.subr.bf16.mxu0 %v476
    %567 = vmatpush2.bf16.msra.mxu0 %v475
    %568 = vmatprep.mubr.bf16.mxu0 %v513
    %569 = vmatmul.mubr.bf16.gmra.mxu0 %v278
    %v570 = vpop.f32.mrf.mxu0
    %v571 = vadd.f32 %v339, %v570
    %v572 = vpop.f32.mrf.mxu0
    %v573 = vadd.f32 %v343, %v572
    %v574 = vpop.f32.mrf.mxu0
    %v575 = vadd.f32 %v339, %v574
    %v576 = vpop.f32.mrf.mxu0
    %v577 = vadd.f32 %v343, %v576
    %578 = vmatprep.mubr.bf16.mxu0 %v516
    %579 = vmatmul.mubr.bf16.gmra.mxu0 %v280
    %v580 = vpop.f32.mrf.mxu0
    %v581 = vadd.f32 %v339, %v580
    %v582 = vpop.f32.mrf.mxu0
    %v583 = vadd.f32 %v343, %v582
    %v584 = vpop.f32.mrf.mxu0
    %v585 = vadd.f32 %v339, %v584
    %v586 = vpop.f32.mrf.mxu0
    %v587 = vadd.f32 %v343, %v586
    %588 = vmatprep.mubr.bf16.mxu0 %v519
    %589 = vmatmul.mubr.bf16.gmra.mxu0 %v282
    %v590 = vpop.f32.mrf.mxu0
    %v591 = vadd.f32 %v339, %v590
    %v592 = vpop.f32.mrf.mxu0
    %v593 = vadd.f32 %v343, %v592
    %v594 = vpop.f32.mrf.mxu0
    %v595 = vadd.f32 %v339, %v594
    %v596 = vpop.f32.mrf.mxu0
    %v597 = vadd.f32 %v343, %v596
    %598 = vmatprep.mubr.bf16.mxu0 %v522
    %599 = vmatmul.mubr.bf16.gmra.mxu0 %v284
    %v600 = vpop.f32.mrf.mxu0
    %v601 = vadd.f32 %v339, %v600
    %v602 = vpop.f32.mrf.mxu0
    %v603 = vadd.f32 %v343, %v602
    %v604 = vpop.f32.mrf.mxu0
    %v605 = vadd.f32 %v339, %v604
    %v606 = vpop.f32.mrf.mxu0
    %v607 = vadd.f32 %v343, %v606
    %608 = vmatprep.mubr.bf16.mxu0 %v525
    %609 = vmatmul.mubr.bf16.gmra.mxu0 %v286
    %v610 = vpop.f32.mrf.mxu0
    %v611 = vadd.f32 %v339, %v610
    %v612 = vpop.f32.mrf.mxu0
    %v613 = vadd.f32 %v343, %v612
    %v614 = vpop.f32.mrf.mxu0
    %v615 = vadd.f32 %v339, %v614
    %v616 = vpop.f32.mrf.mxu0
    %v617 = vadd.f32 %v343, %v616
    %618 = vmatprep.mubr.bf16.mxu0 %v528
    %619 = vmatmul.mubr.bf16.gmra.mxu0 %v288
    %v620 = vpop.f32.mrf.mxu0
    %v621 = vadd.f32 %v339, %v620
    %v622 = vpop.f32.mrf.mxu0
    %v623 = vadd.f32 %v343, %v622
    %v624 = vpop.f32.mrf.mxu0
    %v625 = vadd.f32 %v339, %v624
    %v626 = vpop.f32.mrf.mxu0
    %v627 = vadd.f32 %v343, %v626
    %628 = vmatprep.mubr.bf16.mxu0 %v531
    %629 = vmatmul.mubr.bf16.gmra.mxu0 %v290
    %v630 = vpop.f32.mrf.mxu0
    %v631 = vadd.f32 %v339, %v630
    %v632 = vpop.f32.mrf.mxu0
    %v633 = vadd.f32 %v343, %v632
    %v634 = vpop.f32.mrf.mxu0
    %v635 = vadd.f32 %v339, %v634
    %v636 = vpop.f32.mrf.mxu0
    %v637 = vadd.f32 %v343, %v636
    %638 = vmatprep.mubr.bf16.mxu0 %v534
    %639 = vmatmul.mubr.bf16.gmra.mxu0 %v292
    %v640 = vpop.f32.mrf.mxu0
    %v641 = vadd.f32 %v339, %v640
    %v642 = vpop.f32.mrf.mxu0
    %v643 = vadd.f32 %v343, %v642
    %v644 = vpop.f32.mrf.mxu0
    %v645 = vadd.f32 %v339, %v644
    %v646 = vpop.f32.mrf.mxu0
    %v647 = vadd.f32 %v343, %v646
    %648 = vdwg.mxu0
    %649 = vmatprep.subr.bf16.mxu0 0
    %650 = vmatpush1.bf16.msra.mxu0 %v474
    %651 = vmatprep.subr.bf16.mxu0 0
    %652 = vmatpush1.bf16.msra.mxu0 %v471
    %653 = vmatprep.subr.bf16.mxu0 0
    %654 = vmatpush1.bf16.msra.mxu0 %v468
    %655 = vmatprep.subr.bf16.mxu0 0
    %656 = vmatpush1.bf16.msra.mxu0 %v465
    %657 = vmatprep.subr.bf16.mxu0 0
    %658 = vmatpush1.bf16.msra.mxu0 %v462
    %659 = vmatprep.subr.bf16.mxu0 0
    %660 = vmatpush1.bf16.msra.mxu0 %v459
    %661 = vmatprep.subr.bf16.mxu0 0
    %662 = vmatpush1.bf16.msra.mxu0 %v456
    %663 = vmatprep.subr.bf16.mxu0 0
    %664 = vmatpush1.bf16.msra.mxu0 %v453
    %665 = vmatprep.subr.bf16.mxu0 0
    %666 = vmatpush2.bf16.msra.mxu0 0
    %667 = vmatprep.subr.bf16.mxu0 0
    %668 = vmatpush2.bf16.msra.mxu0 0
    %669 = vmatprep.subr.bf16.mxu0 0
    %670 = vmatpush2.bf16.msra.mxu0 0
    %671 = vmatprep.subr.bf16.mxu0 0
    %672 = vmatpush2.bf16.msra.mxu0 0
    %673 = vmatprep.subr.bf16.mxu0 0
    %674 = vmatpush2.bf16.msra.mxu0 0
    %675 = vmatprep.subr.bf16.mxu0 0
    %676 = vmatpush2.bf16.msra.mxu0 0
    %677 = vmatprep.subr.bf16.mxu0 0
    %678 = vmatpush2.bf16.msra.mxu0 %v480
    %679 = vmatprep.subr.bf16.mxu0 0
    %680 = vmatpush2.bf16.msra.mxu0 %v477
    %681 = vmatprep.mubr.bf16.mxu0 %v513
    %682 = vmatmul.mubr.bf16.gmra.mxu0 %v278
    %v683 = vpop.f32.mrf.mxu0
    %v684 = vadd.f32 %v347, %v683
    %v685 = vpop.f32.mrf.mxu0
    %v686 = vpop.f32.mrf.mxu0
    %v687 = vadd.f32 %v347, %v686
    %v688 = vpop.f32.mrf.mxu0
    %689 = vmatprep.mubr.bf16.mxu0 %v516
    %690 = vmatmul.mubr.bf16.gmra.mxu0 %v280
    %v691 = vpop.f32.mrf.mxu0
    %v692 = vadd.f32 %v347, %v691
    %v693 = vpop.f32.mrf.mxu0
    %v694 = vpop.f32.mrf.mxu0
    %v695 = vadd.f32 %v347, %v694
    %v696 = vpop.f32.mrf.mxu0
    %697 = vmatprep.mubr.bf16.mxu0 %v519
    %698 = vmatmul.mubr.bf16.gmra.mxu0 %v282
    %v699 = vpop.f32.mrf.mxu0
    %v700 = vadd.f32 %v347, %v699
    %v701 = vpop.f32.mrf.mxu0
    %v702 = vpop.f32.mrf.mxu0
    %v703 = vadd.f32 %v347, %v702
    %v704 = vpop.f32.mrf.mxu0
    %705 = vmatprep.mubr.bf16.mxu0 %v522
    %706 = vmatmul.mubr.bf16.gmra.mxu0 %v284
    %v707 = vpop.f32.mrf.mxu0
    %v708 = vadd.f32 %v347, %v707
    %v709 = vpop.f32.mrf.mxu0
    %v710 = vpop.f32.mrf.mxu0
    %v711 = vadd.f32 %v347, %v710
    %v712 = vpop.f32.mrf.mxu0
    %713 = vmatprep.mubr.bf16.mxu0 %v525
    %714 = vmatmul.mubr.bf16.gmra.mxu0 %v286
    %v715 = vpop.f32.mrf.mxu0
    %v716 = vadd.f32 %v347, %v715
    %v717 = vpop.f32.mrf.mxu0
    %v718 = vpop.f32.mrf.mxu0
    %v719 = vadd.f32 %v347, %v718
    %v720 = vpop.f32.mrf.mxu0
    %721 = vmatprep.mubr.bf16.mxu0 %v528
    %722 = vmatmul.mubr.bf16.gmra.mxu0 %v288
    %v723 = vpop.f32.mrf.mxu0
    %v724 = vadd.f32 %v347, %v723
    %v725 = vpop.f32.mrf.mxu0
    %v726 = vpop.f32.mrf.mxu0
    %v727 = vadd.f32 %v347, %v726
    %v728 = vpop.f32.mrf.mxu0
    %729 = vmatprep.mubr.bf16.mxu0 %v531
    %730 = vmatmul.mubr.bf16.gmra.mxu0 %v290
    %v731 = vpop.f32.mrf.mxu0
    %v732 = vadd.f32 %v347, %v731
    %v733 = vpop.f32.mrf.mxu0
    %v734 = vpop.f32.mrf.mxu0
    %v735 = vadd.f32 %v347, %v734
    %v736 = vpop.f32.mrf.mxu0
    %737 = vmatprep.mubr.bf16.mxu0 %v534
    %738 = vmatmul.mubr.bf16.gmra.mxu0 %v292
    %v739 = vpop.f32.mrf.mxu0
    %v740 = vadd.f32 %v347, %v739
    %v741 = vpop.f32.mrf.mxu0
    %v742 = vpop.f32.mrf.mxu0
    %v743 = vadd.f32 %v347, %v742
    %v744 = vpop.f32.mrf.mxu0
    %745 = vdwg.mxu0
    %v746 = vmax.f32 %v571, 0.0
    %v747 = vmax.f32 %v573, 0.0
    %v748 = vmax.f32 %v684, 0.0
    %v749 = vmax.f32 %v575, 0.0
    %v750 = vmax.f32 %v577, 0.0
    %v751 = vmax.f32 %v687, 0.0
    %v752 = vmax.f32 %v581, 0.0
    %v753 = vmax.f32 %v583, 0.0
    %v754 = vmax.f32 %v692, 0.0
    %v755 = vmax.f32 %v585, 0.0
    %v756 = vmax.f32 %v587, 0.0
    %v757 = vmax.f32 %v695, 0.0
    %v758 = vmax.f32 %v591, 0.0
    %v759 = vmax.f32 %v593, 0.0
    %v760 = vmax.f32 %v700, 0.0
    %v761 = vmax.f32 %v595, 0.0
    %v762 = vmax.f32 %v597, 0.0
    %v763 = vmax.f32 %v703, 0.0
    %v764 = vmax.f32 %v601, 0.0
    %v765 = vmax.f32 %v603, 0.0
    %v766 = vmax.f32 %v708, 0.0
    %v767 = vmax.f32 %v605, 0.0
    %v768 = vmax.f32 %v607, 0.0
    %v769 = vmax.f32 %v711, 0.0
    %v770 = vmax.f32 %v611, 0.0
    %v771 = vmax.f32 %v613, 0.0
    %v772 = vmax.f32 %v716, 0.0
    %v773 = vmax.f32 %v615, 0.0
    %v774 = vmax.f32 %v617, 0.0
    %v775 = vmax.f32 %v719, 0.0
    %v776 = vmax.f32 %v621, 0.0
    %v777 = vmax.f32 %v623, 0.0
    %v778 = vmax.f32 %v724, 0.0
    %v779 = vmax.f32 %v625, 0.0
    %v780 = vmax.f32 %v627, 0.0
    %v781 = vmax.f32 %v727, 0.0
    %v782 = vmax.f32 %v631, 0.0
    %v783 = vmax.f32 %v633, 0.0
    %v784 = vmax.f32 %v732, 0.0
    %v785 = vmax.f32 %v635, 0.0
    %v786 = vmax.f32 %v637, 0.0
    %v787 = vmax.f32 %v735, 0.0
    %v788 = vmax.f32 %v641, 0.0
    %v789 = vmax.f32 %v643, 0.0
    %v790 = vmax.f32 %v740, 0.0
    %v791 = vmax.f32 %v645, 0.0
    %v792 = vmax.f32 %v647, 0.0
    %v793 = vmax.f32 %v743, 0.0
    %v794 = vpack.c.bf16 %v749, %v746
    %v795 = vpack.c.bf16 %v750, %v747
    %v796 = vpack.c.bf16 %v751, %v748
    %v797 = vpack.c.bf16 %v755, %v752
    %v798 = vpack.c.bf16 %v756, %v753
    %v799 = vpack.c.bf16 %v757, %v754
    %v800 = vpack.c.bf16 %v761, %v758
    %v801 = vpack.c.bf16 %v762, %v759
    %v802 = vpack.c.bf16 %v763, %v760
    %v803 = vpack.c.bf16 %v767, %v764
    %v804 = vpack.c.bf16 %v768, %v765
    %v805 = vpack.c.bf16 %v769, %v766
    %v806 = vpack.c.bf16 %v773, %v770
    %v807 = vpack.c.bf16 %v774, %v771
    %v808 = vpack.c.bf16 %v775, %v772
    %v809 = vpack.c.bf16 %v779, %v776
    %v810 = vpack.c.bf16 %v780, %v777
    %v811 = vpack.c.bf16 %v781, %v778
    %v812 = vpack.c.bf16 %v785, %v782
    %v813 = vpack.c.bf16 %v786, %v783
    %v814 = vpack.c.bf16 %v787, %v784
    %v815 = vpack.c.bf16 %v791, %v788
    %v816 = vpack.c.bf16 %v792, %v789
    %v817 = vpack.c.bf16 %v793, %v790
    %v818 = vld [vmem:[%s5] sm:$0xff]
    %v819 = vld [vmem:[%s5 + $0x8] sm:$0xff]
    %v820 = vld [vmem:[%s5 + $0x10] sm:$0xff]
    %v821 = vld [vmem:[%s5 + $0x18] sm:$0xff]
    %v822 = vld [vmem:[%s5 + $0x20] sm:$0xff]
    %v823 = vld [vmem:[%s5 + $0x28] sm:$0xff]
    %v824 = vld [vmem:[%s5 + $0x30] sm:$0xff]
    %v825 = vld [vmem:[%s5 + $0x38] sm:$0xff]
    %v826 = vld [vmem:[%s5 + $0x40] sm:$0xff]
    %v827 = vld [vmem:[%s5 + $0x48] sm:$0xff]
    %v828 = vld [vmem:[%s5 + $0x50] sm:$0xff]
    %v829 = vld [vmem:[%s5 + $0x58] sm:$0xff]
    %v830 = vld [vmem:[%s5 + $0x60] sm:$0xff]
    %v831 = vld [vmem:[%s5 + $0x68] sm:$0xff]
    %v832 = vld [vmem:[%s5 + $0x70] sm:$0xff]
    %v833 = vld [vmem:[%s5 + $0x78] sm:$0xff]
    %v834 = vld [vmem:[%s5 + $0x80] sm:$0xff]
    %v835 = vld [vmem:[%s5 + $0x88] sm:$0xff]
    %v836 = vld [vmem:[%s5 + $0x90] sm:$0xff]
    %v837 = vld [vmem:[%s5 + $0x98] sm:$0xff]
    %v838 = vld [vmem:[%s5 + $0xa0] sm:$0xff]
    %v839 = vld [vmem:[%s5 + $0xa8] sm:$0xff]
    %v840 = vld [vmem:[%s5 + $0xb0] sm:$0xff]
    %v841 = vld [vmem:[%s5 + $0xb8] sm:$0xff]
    %v842 = vld [vmem:[%s5 + $0xc0] sm:$0xff]
    %v843 = vld [vmem:[%s5 + $0xc8] sm:$0xff]
    %v844 = vld [vmem:[%s5 + $0xd0] sm:$0xff]
    %v845 = vld [vmem:[%s5 + $0xd8] sm:$0xff]
    %v846 = vld [vmem:[%s5 + $0xe0] sm:$0xff]
    %v847 = vld [vmem:[%s5 + $0xe8] sm:$0xff]
    %v848 = vld [vmem:[%s5 + $0xf0] sm:$0xff]
    %v849 = vld [vmem:[%s5 + $0xf8] sm:$0xff]
    %v850 = vld [vmem:[%s5 + $0x100] sm:$0xff]
    %v851 = vld [vmem:[%s5 + $0x108] sm:$0xff]
    %v852 = vld [vmem:[%s5 + $0x110] sm:$0xff]
    %v853 = vld [vmem:[%s5 + $0x118] sm:$0xff]
    %v854 = vld [vmem:[%s5 + $0x120] sm:$0xff]
    %v855 = vld [vmem:[%s5 + $0x128] sm:$0xff]
    %v856 = vld [vmem:[%s5 + $0x130] sm:$0xff]
    %v857 = vld [vmem:[%s5 + $0x138] sm:$0xff]
    %v858 = vld [vmem:[%s6] sm:$0x3]
    %v860 = vlaneseq
    %v861 = vshrl.u32 %v860, 7
    %v862 = vsub.s32 0, %v861
    %v863 = vrot.slane %v858, %v862
    %v864 = vlaneseq
    %v865 = vshrl.u32 %v864, 7
    %v866 = vsub.s32 1, %v865
    %v867 = vrot.slane %v858, %v866
    %v910 = vunpack.c.l.b16 %v818
    %v911 = vunpack.c.h.b16 %v818
    %v912 = vunpack.c.l.b16 %v819
    %v913 = vunpack.c.h.b16 %v819
    %v914 = vunpack.c.l.b16 %v820
    %v915 = vunpack.c.h.b16 %v820
    %v916 = vunpack.c.l.b16 %v821
    %v917 = vunpack.c.h.b16 %v821
    %v918 = vunpack.c.l.b16 %v822
    %v919 = vunpack.c.h.b16 %v822
    %v920 = vunpack.c.l.b16 %v823
    %v921 = vunpack.c.h.b16 %v823
    %v922 = vunpack.c.l.b16 %v824
    %v923 = vunpack.c.h.b16 %v824
    %v924 = vunpack.c.l.b16 %v825
    %v925 = vunpack.c.h.b16 %v825
    %v926 = vunpack.c.l.b16 %v826
    %v927 = vunpack.c.h.b16 %v826
    %v928 = vunpack.c.l.b16 %v827
    %v929 = vunpack.c.h.b16 %v827
    %v930 = vunpack.c.l.b16 %v828
    %v931 = vunpack.c.h.b16 %v828
    %v932 = vunpack.c.l.b16 %v829
    %v933 = vunpack.c.h.b16 %v829
    %v934 = vunpack.c.l.b16 %v830
    %v935 = vunpack.c.h.b16 %v830
    %v936 = vunpack.c.l.b16 %v831
    %v937 = vunpack.c.h.b16 %v831
    %v938 = vunpack.c.l.b16 %v832
    %v939 = vunpack.c.h.b16 %v832
    %v940 = vunpack.c.l.b16 %v833
    %v941 = vunpack.c.h.b16 %v833
    %v942 = vunpack.c.l.b16 %v834
    %v943 = vunpack.c.h.b16 %v834
    %v944 = vunpack.c.l.b16 %v835
    %v945 = vunpack.c.h.b16 %v835
    %v946 = vunpack.c.l.b16 %v836
    %v947 = vunpack.c.h.b16 %v836
    %v948 = vunpack.c.l.b16 %v837
    %v949 = vunpack.c.h.b16 %v837
    %v950 = vunpack.c.l.b16 %v838
    %v951 = vunpack.c.h.b16 %v838
    %v952 = vunpack.c.l.b16 %v839
    %v953 = vunpack.c.h.b16 %v839
    %v954 = vunpack.c.l.b16 %v840
    %v955 = vunpack.c.h.b16 %v840
    %v956 = vunpack.c.l.b16 %v841
    %v957 = vunpack.c.h.b16 %v841
    %v958 = vunpack.c.l.b16 %v842
    %v959 = vunpack.c.h.b16 %v842
    %v960 = vunpack.c.l.b16 %v843
    %v961 = vunpack.c.h.b16 %v843
    %v962 = vunpack.c.l.b16 %v844
    %v963 = vunpack.c.h.b16 %v844
    %v964 = vunpack.c.l.b16 %v845
    %v965 = vunpack.c.h.b16 %v845
    %v966 = vunpack.c.l.b16 %v846
    %v967 = vunpack.c.h.b16 %v846
    %v968 = vunpack.c.l.b16 %v847
    %v969 = vunpack.c.h.b16 %v847
    %v970 = vunpack.c.l.b16 %v848
    %v971 = vunpack.c.h.b16 %v848
    %v972 = vunpack.c.l.b16 %v849
    %v973 = vunpack.c.h.b16 %v849
    %v974 = vunpack.c.l.b16 %v850
    %v975 = vunpack.c.h.b16 %v850
    %v976 = vunpack.c.l.b16 %v851
    %v977 = vunpack.c.h.b16 %v851
    %v978 = vunpack.c.l.b16 %v852
    %v979 = vunpack.c.h.b16 %v852
    %v980 = vunpack.c.l.b16 %v853
    %v981 = vunpack.c.h.b16 %v853
    %v982 = vunpack.c.l.b16 %v854
    %v983 = vunpack.c.h.b16 %v854
    %v984 = vunpack.c.l.b16 %v855
    %v985 = vunpack.c.h.b16 %v855
    %v986 = vunpack.c.l.b16 %v856
    %v987 = vunpack.c.h.b16 %v856
    %v988 = vunpack.c.l.b16 %v857
    %v989 = vunpack.c.h.b16 %v857
    %v990 = vpack.c.b16 %v912, %v910
    %v991 = vpack.c.b16 %v913, %v911
    %v992 = vpack.c.b16 %v916, %v914
    %v993 = vpack.c.b16 %v917, %v915
    %v994 = vpack.c.b16 %v920, %v918
    %v995 = vpack.c.b16 %v921, %v919
    %v996 = vpack.c.b16 %v924, %v922
    %v997 = vpack.c.b16 %v925, %v923
    %v998 = vpack.c.b16 %v928, %v926
    %v999 = vpack.c.b16 %v929, %v927
    %v1000 = vpack.c.b16 %v932, %v930
    %v1001 = vpack.c.b16 %v933, %v931
    %v1002 = vpack.c.b16 %v936, %v934
    %v1003 = vpack.c.b16 %v937, %v935
    %v1004 = vpack.c.b16 %v940, %v938
    %v1005 = vpack.c.b16 %v941, %v939
    %v1006 = vpack.c.b16 %v944, %v942
    %v1007 = vpack.c.b16 %v945, %v943
    %v1008 = vpack.c.b16 %v948, %v946
    %v1009 = vpack.c.b16 %v949, %v947
    %v1010 = vpack.c.b16 %v952, %v950
    %v1011 = vpack.c.b16 %v953, %v951
    %v1012 = vpack.c.b16 %v956, %v954
    %v1013 = vpack.c.b16 %v957, %v955
    %v1014 = vpack.c.b16 %v960, %v958
    %v1015 = vpack.c.b16 %v961, %v959
    %v1016 = vpack.c.b16 %v964, %v962
    %v1017 = vpack.c.b16 %v965, %v963
    %v1018 = vpack.c.b16 %v968, %v966
    %v1019 = vpack.c.b16 %v969, %v967
    %v1020 = vpack.c.b16 %v972, %v970
    %v1021 = vpack.c.b16 %v973, %v971
    %v1022 = vpack.c.b16 %v976, %v974
    %v1023 = vpack.c.b16 %v977, %v975
    %v1024 = vpack.c.b16 %v980, %v978
    %v1025 = vpack.c.b16 %v981, %v979
    %v1026 = vpack.c.b16 %v984, %v982
    %v1027 = vpack.c.b16 %v985, %v983
    %v1028 = vpack.c.b16 %v988, %v986
    %v1029 = vpack.c.b16 %v989, %v987
    %vm1070 = vcmask 523264
    %v1072 = vsel %vm1070, %v796, 0
    %v1075 = vsel %vm1070, %v799, 0
    %v1078 = vsel %vm1070, %v802, 0
    %v1081 = vsel %vm1070, %v805, 0
    %v1084 = vsel %vm1070, %v808, 0
    %v1087 = vsel %vm1070, %v811, 0
    %v1090 = vsel %vm1070, %v814, 0
    %v1093 = vsel %vm1070, %v817, 0
    %1095 = vmatprep.subr.bf16.mxu0 %v1005
    %1096 = vmatpush1.bf16.msra.mxu0 %v1004
    %1097 = vmatprep.subr.bf16.mxu0 %v1003
    %1098 = vmatpush1.bf16.msra.mxu0 %v1002
    %1099 = vmatprep.subr.bf16.mxu0 %v1001
    %1100 = vmatpush1.bf16.msra.mxu0 %v1000
    %1101 = vmatprep.subr.bf16.mxu0 %v999
    %1102 = vmatpush1.bf16.msra.mxu0 %v998
    %1103 = vmatprep.subr.bf16.mxu0 %v997
    %1104 = vmatpush1.bf16.msra.mxu0 %v996
    %1105 = vmatprep.subr.bf16.mxu0 %v995
    %1106 = vmatpush1.bf16.msra.mxu0 %v994
    %1107 = vmatprep.subr.bf16.mxu0 %v993
    %1108 = vmatpush1.bf16.msra.mxu0 %v992
    %1109 = vmatprep.subr.bf16.mxu0 %v991
    %1110 = vmatpush1.bf16.msra.mxu0 %v990
    %1111 = vmatprep.subr.bf16.mxu0 %v1021
    %1112 = vmatpush2.bf16.msra.mxu0 %v1020
    %1113 = vmatprep.subr.bf16.mxu0 %v1019
    %1114 = vmatpush2.bf16.msra.mxu0 %v1018
    %1115 = vmatprep.subr.bf16.mxu0 %v1017
    %1116 = vmatpush2.bf16.msra.mxu0 %v1016
    %1117 = vmatprep.subr.bf16.mxu0 %v1015
    %1118 = vmatpush2.bf16.msra.mxu0 %v1014
    %1119 = vmatprep.subr.bf16.mxu0 %v1013
    %1120 = vmatpush2.bf16.msra.mxu0 %v1012
    %1121 = vmatprep.subr.bf16.mxu0 %v1011
    %1122 = vmatpush2.bf16.msra.mxu0 %v1010
    %1123 = vmatprep.subr.bf16.mxu0 %v1009
    %1124 = vmatpush2.bf16.msra.mxu0 %v1008
    %1125 = vmatprep.subr.bf16.mxu0 %v1007
    %1126 = vmatpush2.bf16.msra.mxu0 %v1006
    %1127 = vmatprep.mubr.bf16.mxu0 %v795
    %1128 = vmatmul.mubr.bf16.gmra.mxu0 %v794
    %v1129 = vpop.f32.mrf.mxu0
    %v1130 = vadd.f32 %v863, %v1129
    %v1131 = vpop.f32.mrf.mxu0
    %v1132 = vadd.f32 %v867, %v1131
    %v1133 = vpop.f32.mrf.mxu0
    %v1134 = vadd.f32 %v863, %v1133
    %v1135 = vpop.f32.mrf.mxu0
    %v1136 = vadd.f32 %v867, %v1135
    %1137 = vmatprep.mubr.bf16.mxu0 %v798
    %1138 = vmatmul.mubr.bf16.gmra.mxu0 %v797
    %v1139 = vpop.f32.mrf.mxu0
    %v1140 = vadd.f32 %v863, %v1139
    %v1141 = vpop.f32.mrf.mxu0
    %v1142 = vadd.f32 %v867, %v1141
    %v1143 = vpop.f32.mrf.mxu0
    %v1144 = vadd.f32 %v863, %v1143
    %v1145 = vpop.f32.mrf.mxu0
    %v1146 = vadd.f32 %v867, %v1145
    %1147 = vmatprep.mubr.bf16.mxu0 %v801
    %1148 = vmatmul.mubr.bf16.gmra.mxu0 %v800
    %v1149 = vpop.f32.mrf.mxu0
    %v1150 = vadd.f32 %v863, %v1149
    %v1151 = vpop.f32.mrf.mxu0
    %v1152 = vadd.f32 %v867, %v1151
    %v1153 = vpop.f32.mrf.mxu0
    %v1154 = vadd.f32 %v863, %v1153
    %v1155 = vpop.f32.mrf.mxu0
    %v1156 = vadd.f32 %v867, %v1155
    %1157 = vmatprep.mubr.bf16.mxu0 %v804
    %1158 = vmatmul.mubr.bf16.gmra.mxu0 %v803
    %v1159 = vpop.f32.mrf.mxu0
    %v1160 = vadd.f32 %v863, %v1159
    %v1161 = vpop.f32.mrf.mxu0
    %v1162 = vadd.f32 %v867, %v1161
    %v1163 = vpop.f32.mrf.mxu0
    %v1164 = vadd.f32 %v863, %v1163
    %v1165 = vpop.f32.mrf.mxu0
    %v1166 = vadd.f32 %v867, %v1165
    %1167 = vmatprep.mubr.bf16.mxu0 %v807
    %1168 = vmatmul.mubr.bf16.gmra.mxu0 %v806
    %v1169 = vpop.f32.mrf.mxu0
    %v1170 = vadd.f32 %v863, %v1169
    %v1171 = vpop.f32.mrf.mxu0
    %v1172 = vadd.f32 %v867, %v1171
    %v1173 = vpop.f32.mrf.mxu0
    %v1174 = vadd.f32 %v863, %v1173
    %v1175 = vpop.f32.mrf.mxu0
    %v1176 = vadd.f32 %v867, %v1175
    %1177 = vmatprep.mubr.bf16.mxu0 %v810
    %1178 = vmatmul.mubr.bf16.gmra.mxu0 %v809
    %v1179 = vpop.f32.mrf.mxu0
    %v1180 = vadd.f32 %v863, %v1179
    %v1181 = vpop.f32.mrf.mxu0
    %v1182 = vadd.f32 %v867, %v1181
    %v1183 = vpop.f32.mrf.mxu0
    %v1184 = vadd.f32 %v863, %v1183
    %v1185 = vpop.f32.mrf.mxu0
    %v1186 = vadd.f32 %v867, %v1185
    %1187 = vmatprep.mubr.bf16.mxu0 %v813
    %1188 = vmatmul.mubr.bf16.gmra.mxu0 %v812
    %v1189 = vpop.f32.mrf.mxu0
    %v1190 = vadd.f32 %v863, %v1189
    %v1191 = vpop.f32.mrf.mxu0
    %v1192 = vadd.f32 %v867, %v1191
    %v1193 = vpop.f32.mrf.mxu0
    %v1194 = vadd.f32 %v863, %v1193
    %v1195 = vpop.f32.mrf.mxu0
    %v1196 = vadd.f32 %v867, %v1195
    %1197 = vmatprep.mubr.bf16.mxu0 %v816
    %1198 = vmatmul.mubr.bf16.gmra.mxu0 %v815
    %v1199 = vpop.f32.mrf.mxu0
    %v1200 = vadd.f32 %v863, %v1199
    %v1201 = vpop.f32.mrf.mxu0
    %v1202 = vadd.f32 %v867, %v1201
    %v1203 = vpop.f32.mrf.mxu0
    %v1204 = vadd.f32 %v863, %v1203
    %v1205 = vpop.f32.mrf.mxu0
    %v1206 = vadd.f32 %v867, %v1205
    %1207 = vdwg.mxu0
    %1208 = vmatprep.subr.bf16.mxu0 0
    %1209 = vmatpush1.bf16.msra.mxu0 0
    %1210 = vmatprep.subr.bf16.mxu0 0
    %1211 = vmatpush1.bf16.msra.mxu0 0
    %1212 = vmatprep.subr.bf16.mxu0 0
    %1213 = vmatpush1.bf16.msra.mxu0 0
    %1214 = vmatprep.subr.bf16.mxu0 0
    %1215 = vmatpush1.bf16.msra.mxu0 0
    %1216 = vmatprep.subr.bf16.mxu0 %v1029
    %1217 = vmatpush1.bf16.msra.mxu0 %v1028
    %1218 = vmatprep.subr.bf16.mxu0 %v1027
    %1219 = vmatpush1.bf16.msra.mxu0 %v1026
    %1220 = vmatprep.subr.bf16.mxu0 %v1025
    %1221 = vmatpush1.bf16.msra.mxu0 %v1024
    %1222 = vmatprep.subr.bf16.mxu0 %v1023
    %1223 = vmatpush1.bf16.msra.mxu0 %v1022
    %1224 = vmatprep.subr.bf16.mxu0 0
    %1225 = vmatpush2.bf16.msra.mxu0 0
    %1226 = vmatprep.subr.bf16.mxu0 0
    %1227 = vmatpush2.bf16.msra.mxu0 0
    %1228 = vmatprep.subr.bf16.mxu0 0
    %1229 = vmatpush2.bf16.msra.mxu0 0
    %1230 = vmatprep.subr.bf16.mxu0 0
    %1231 = vmatpush2.bf16.msra.mxu0 0
    %1232 = vmatprep.subr.bf16.mxu0 0
    %1233 = vmatpush2.bf16.msra.mxu0 0
    %1234 = vmatprep.subr.bf16.mxu0 0
    %1235 = vmatpush2.bf16.msra.mxu0 0
    %1236 = vmatprep.subr.bf16.mxu0 0
    %1237 = vmatpush2.bf16.msra.mxu0 0
    %1238 = vmatprep.subr.bf16.mxu0 0
    %1239 = vmatpush2.bf16.msra.mxu0 0
    %1240 = vmatprep.mubr.bf16.mxu0 0
    %1241 = vmatmul.mubr.bf16.gmra.mxu0 %v1072
    %v1242 = vpop.f32.mrf.mxu0
    %v1243 = vadd.f32 %v1130, %v1242
    %v1244 = vpop.f32.mrf.mxu0
    %v1245 = vadd.f32 %v1132, %v1244
    %v1246 = vpop.f32.mrf.mxu0
    %v1247 = vadd.f32 %v1134, %v1246
    %v1248 = vpop.f32.mrf.mxu0
    %v1249 = vadd.f32 %v1136, %v1248
    %1250 = vmatprep.mubr.bf16.mxu0 0
    %1251 = vmatmul.mubr.bf16.gmra.mxu0 %v1075
    %v1252 = vpop.f32.mrf.mxu0
    %v1253 = vadd.f32 %v1140, %v1252
    %v1254 = vpop.f32.mrf.mxu0
    %v1255 = vadd.f32 %v1142, %v1254
    %v1256 = vpop.f32.mrf.mxu0
    %v1257 = vadd.f32 %v1144, %v1256
    %v1258 = vpop.f32.mrf.mxu0
    %v1259 = vadd.f32 %v1146, %v1258
    %1260 = vmatprep.mubr.bf16.mxu0 0
    %1261 = vmatmul.mubr.bf16.gmra.mxu0 %v1078
    %v1262 = vpop.f32.mrf.mxu0
    %v1263 = vadd.f32 %v1150, %v1262
    %v1264 = vpop.f32.mrf.mxu0
    %v1265 = vadd.f32 %v1152, %v1264
    %v1266 = vpop.f32.mrf.mxu0
    %v1267 = vadd.f32 %v1154, %v1266
    %v1268 = vpop.f32.mrf.mxu0
    %v1269 = vadd.f32 %v1156, %v1268
    %1270 = vmatprep.mubr.bf16.mxu0 0
    %1271 = vmatmul.mubr.bf16.gmra.mxu0 %v1081
    %v1272 = vpop.f32.mrf.mxu0
    %v1273 = vadd.f32 %v1160, %v1272
    %v1274 = vpop.f32.mrf.mxu0
    %v1275 = vadd.f32 %v1162, %v1274
    %v1276 = vpop.f32.mrf.mxu0
    %v1277 = vadd.f32 %v1164, %v1276
    %v1278 = vpop.f32.mrf.mxu0
    %v1279 = vadd.f32 %v1166, %v1278
    %1280 = vmatprep.mubr.bf16.mxu0 0
    %1281 = vmatmul.mubr.bf16.gmra.mxu0 %v1084
    %v1282 = vpop.f32.mrf.mxu0
    %v1283 = vadd.f32 %v1170, %v1282
    %v1284 = vpop.f32.mrf.mxu0
    %v1285 = vadd.f32 %v1172, %v1284
    %v1286 = vpop.f32.mrf.mxu0
    %v1287 = vadd.f32 %v1174, %v1286
    %v1288 = vpop.f32.mrf.mxu0
    %v1289 = vadd.f32 %v1176, %v1288
    %1290 = vmatprep.mubr.bf16.mxu0 0
    %1291 = vmatmul.mubr.bf16.gmra.mxu0 %v1087
    %v1292 = vpop.f32.mrf.mxu0
    %v1293 = vadd.f32 %v1180, %v1292
    %v1294 = vpop.f32.mrf.mxu0
    %v1295 = vadd.f32 %v1182, %v1294
    %v1296 = vpop.f32.mrf.mxu0
    %v1297 = vadd.f32 %v1184, %v1296
    %v1298 = vpop.f32.mrf.mxu0
    %v1299 = vadd.f32 %v1186, %v1298
    %1300 = vmatprep.mubr.bf16.mxu0 0
    %1301 = vmatmul.mubr.bf16.gmra.mxu0 %v1090
    %v1302 = vpop.f32.mrf.mxu0
    %v1303 = vadd.f32 %v1190, %v1302
    %v1304 = vpop.f32.mrf.mxu0
    %v1305 = vadd.f32 %v1192, %v1304
    %v1306 = vpop.f32.mrf.mxu0
    %v1307 = vadd.f32 %v1194, %v1306
    %v1308 = vpop.f32.mrf.mxu0
    %v1309 = vadd.f32 %v1196, %v1308
    %1310 = vmatprep.mubr.bf16.mxu0 0
    %1311 = vmatmul.mubr.bf16.gmra.mxu0 %v1093
    %v1312 = vpop.f32.mrf.mxu0
    %v1313 = vadd.f32 %v1200, %v1312
    %v1314 = vpop.f32.mrf.mxu0
    %v1315 = vadd.f32 %v1202, %v1314
    %v1316 = vpop.f32.mrf.mxu0
    %v1317 = vadd.f32 %v1204, %v1316
    %v1318 = vpop.f32.mrf.mxu0
    %v1319 = vadd.f32 %v1206, %v1318
    %1320 = vdwg.mxu0
    %v1321 = vmax.f32 %v1243, 0.0
    %v1322 = vmax.f32 %v1245, 0.0
    %v1323 = vmax.f32 %v1247, 0.0
    %v1324 = vmax.f32 %v1249, 0.0
    %v1325 = vmax.f32 %v1253, 0.0
    %v1326 = vmax.f32 %v1255, 0.0
    %v1327 = vmax.f32 %v1257, 0.0
    %v1328 = vmax.f32 %v1259, 0.0
    %v1329 = vmax.f32 %v1263, 0.0
    %v1330 = vmax.f32 %v1265, 0.0
    %v1331 = vmax.f32 %v1267, 0.0
    %v1332 = vmax.f32 %v1269, 0.0
    %v1333 = vmax.f32 %v1273, 0.0
    %v1334 = vmax.f32 %v1275, 0.0
    %v1335 = vmax.f32 %v1277, 0.0
    %v1336 = vmax.f32 %v1279, 0.0
    %v1337 = vmax.f32 %v1283, 0.0
    %v1338 = vmax.f32 %v1285, 0.0
    %v1339 = vmax.f32 %v1287, 0.0
    %v1340 = vmax.f32 %v1289, 0.0
    %v1341 = vmax.f32 %v1293, 0.0
    %v1342 = vmax.f32 %v1295, 0.0
    %v1343 = vmax.f32 %v1297, 0.0
    %v1344 = vmax.f32 %v1299, 0.0
    %v1345 = vmax.f32 %v1303, 0.0
    %v1346 = vmax.f32 %v1305, 0.0
    %v1347 = vmax.f32 %v1307, 0.0
    %v1348 = vmax.f32 %v1309, 0.0
    %v1349 = vmax.f32 %v1313, 0.0
    %v1350 = vmax.f32 %v1315, 0.0
    %v1351 = vmax.f32 %v1317, 0.0
    %v1352 = vmax.f32 %v1319, 0.0
    %v1353 = vpack.c.bf16 %v1323, %v1321
    %v1354 = vpack.c.bf16 %v1324, %v1322
    %v1355 = vpack.c.bf16 %v1327, %v1325
    %v1356 = vpack.c.bf16 %v1328, %v1326
    %v1357 = vpack.c.bf16 %v1331, %v1329
    %v1358 = vpack.c.bf16 %v1332, %v1330
    %v1359 = vpack.c.bf16 %v1335, %v1333
    %v1360 = vpack.c.bf16 %v1336, %v1334
    %v1361 = vpack.c.bf16 %v1339, %v1337
    %v1362 = vpack.c.bf16 %v1340, %v1338
    %v1363 = vpack.c.bf16 %v1343, %v1341
    %v1364 = vpack.c.bf16 %v1344, %v1342
    %v1365 = vpack.c.bf16 %v1347, %v1345
    %v1366 = vpack.c.bf16 %v1348, %v1346
    %v1367 = vpack.c.bf16 %v1351, %v1349
    %v1368 = vpack.c.bf16 %v1352, %v1350
    %v1369 = vld [vmem:[%s7] sm:$0xf]
    %v1370 = vld [vmem:[%s7 + $0x4] sm:$0xf]
    %v1371 = vld [vmem:[%s7 + $0x8] sm:$0xf]
    %v1372 = vld [vmem:[%s7 + $0xc] sm:$0xf]
    %v1373 = vld [vmem:[%s7 + $0x10] sm:$0xf]
    %v1374 = vld [vmem:[%s7 + $0x14] sm:$0xf]
    %v1375 = vld [vmem:[%s7 + $0x18] sm:$0xf]
    %v1376 = vld [vmem:[%s7 + $0x1c] sm:$0xf]
    %v1377 = vld [vmem:[%s7 + $0x20] sm:$0xf]
    %v1378 = vld [vmem:[%s7 + $0x24] sm:$0xf]
    %v1379 = vld [vmem:[%s7 + $0x28] sm:$0xf]
    %v1380 = vld [vmem:[%s7 + $0x2c] sm:$0xf]
    %v1381 = vld [vmem:[%s7 + $0x30] sm:$0xf]
    %v1382 = vld [vmem:[%s7 + $0x34] sm:$0xf]
    %v1383 = vld [vmem:[%s7 + $0x38] sm:$0xf]
    %v1384 = vld [vmem:[%s7 + $0x3c] sm:$0xf]
    %v1385 = vld [vmem:[%s7 + $0x40] sm:$0xf]
    %v1386 = vld [vmem:[%s7 + $0x44] sm:$0xf]
    %v1387 = vld [vmem:[%s7 + $0x48] sm:$0xf]
    %v1388 = vld [vmem:[%s7 + $0x4c] sm:$0xf]
    %v1389 = vld [vmem:[%s8] sm:$0x1]
    %v1391 = vlaneseq
    %v1392 = vshrl.u32 %v1391, 7
    %v1393 = vsub.s32 0, %v1392
    %v1394 = vrot.slane %v1389, %v1393
    %v1416 = vunpack.c.l.b16 %v1369
    %v1417 = vunpack.c.l.b16 %v1370
    %v1418 = vunpack.c.l.b16 %v1371
    %v1419 = vunpack.c.l.b16 %v1372
    %v1420 = vunpack.c.l.b16 %v1373
    %v1421 = vunpack.c.l.b16 %v1374
    %v1422 = vunpack.c.l.b16 %v1375
    %v1423 = vunpack.c.l.b16 %v1376
    %v1424 = vunpack.c.l.b16 %v1377
    %v1425 = vunpack.c.l.b16 %v1378
    %v1426 = vunpack.c.l.b16 %v1379
    %v1427 = vunpack.c.l.b16 %v1380
    %v1428 = vunpack.c.l.b16 %v1381
    %v1429 = vunpack.c.l.b16 %v1382
    %v1430 = vunpack.c.l.b16 %v1383
    %v1431 = vunpack.c.l.b16 %v1384
    %v1432 = vunpack.c.l.b16 %v1385
    %v1433 = vunpack.c.l.b16 %v1386
    %v1434 = vunpack.c.l.b16 %v1387
    %v1435 = vunpack.c.l.b16 %v1388
    %v1436 = vpack.c.b16 %v1417, %v1416
    %v1437 = vpack.c.b16 %v1419, %v1418
    %v1438 = vpack.c.b16 %v1421, %v1420
    %v1439 = vpack.c.b16 %v1423, %v1422
    %v1440 = vpack.c.b16 %v1425, %v1424
    %v1441 = vpack.c.b16 %v1427, %v1426
    %v1442 = vpack.c.b16 %v1429, %v1428
    %v1443 = vpack.c.b16 %v1431, %v1430
    %v1444 = vpack.c.b16 %v1433, %v1432
    %v1445 = vpack.c.b16 %v1435, %v1434
    %v1457 = vsel %vm511, %v1354, 0
    %v1460 = vsel %vm511, %v1356, 0
    %v1463 = vsel %vm511, %v1358, 0
    %v1466 = vsel %vm511, %v1360, 0
    %v1469 = vsel %vm511, %v1362, 0
    %v1472 = vsel %vm511, %v1364, 0
    %v1475 = vsel %vm511, %v1366, 0
    %v1478 = vsel %vm511, %v1368, 0
    %1480 = vmatprep.subr.bf16.mxu0 0
    %1481 = vmatpush1.bf16.msra.mxu0 %v1443
    %1482 = vmatprep.subr.bf16.mxu0 0
    %1483 = vmatpush1.bf16.msra.mxu0 %v1442
    %1484 = vmatprep.subr.bf16.mxu0 0
    %1485 = vmatpush1.bf16.msra.mxu0 %v1441
    %1486 = vmatprep.subr.bf16.mxu0 0
    %1487 = vmatpush1.bf16.msra.mxu0 %v1440
    %1488 = vmatprep.subr.bf16.mxu0 0
    %1489 = vmatpush1.bf16.msra.mxu0 %v1439
    %1490 = vmatprep.subr.bf16.mxu0 0
    %1491 = vmatpush1.bf16.msra.mxu0 %v1438
    %1492 = vmatprep.subr.bf16.mxu0 0
    %1493 = vmatpush1.bf16.msra.mxu0 %v1437
    %1494 = vmatprep.subr.bf16.mxu0 0
    %1495 = vmatpush1.bf16.msra.mxu0 %v1436
    %1496 = vmatprep.subr.bf16.mxu0 0
    %1497 = vmatpush2.bf16.msra.mxu0 0
    %1498 = vmatprep.subr.bf16.mxu0 0
    %1499 = vmatpush2.bf16.msra.mxu0 0
    %1500 = vmatprep.subr.bf16.mxu0 0
    %1501 = vmatpush2.bf16.msra.mxu0 0
    %1502 = vmatprep.subr.bf16.mxu0 0
    %1503 = vmatpush2.bf16.msra.mxu0 0
    %1504 = vmatprep.subr.bf16.mxu0 0
    %1505 = vmatpush2.bf16.msra.mxu0 0
    %1506 = vmatprep.subr.bf16.mxu0 0
    %1507 = vmatpush2.bf16.msra.mxu0 0
    %1508 = vmatprep.subr.bf16.mxu0 0
    %1509 = vmatpush2.bf16.msra.mxu0 %v1445
    %1510 = vmatprep.subr.bf16.mxu0 0
    %1511 = vmatpush2.bf16.msra.mxu0 %v1444
    %1512 = vmatprep.mubr.bf16.mxu0 %v1457
    %1513 = vmatmul.mubr.bf16.gmra.mxu0 %v1353
    %v1514 = vpop.f32.mrf.mxu0
    %v1515 = vadd.f32 %v1394, %v1514
    %v1516 = vpop.f32.mrf.mxu0
    %v1517 = vpop.f32.mrf.mxu0
    %v1518 = vadd.f32 %v1394, %v1517
    %v1519 = vpop.f32.mrf.mxu0
    %1520 = vmatprep.mubr.bf16.mxu0 %v1460
    %1521 = vmatmul.mubr.bf16.gmra.mxu0 %v1355
    %v1522 = vpop.f32.mrf.mxu0
    %v1523 = vadd.f32 %v1394, %v1522
    %v1524 = vpop.f32.mrf.mxu0
    %v1525 = vpop.f32.mrf.mxu0
    %v1526 = vadd.f32 %v1394, %v1525
    %v1527 = vpop.f32.mrf.mxu0
    %1528 = vmatprep.mubr.bf16.mxu0 %v1463
    %1529 = vmatmul.mubr.bf16.gmra.mxu0 %v1357
    %v1530 = vpop.f32.mrf.mxu0
    %v1531 = vadd.f32 %v1394, %v1530
    %v1532 = vpop.f32.mrf.mxu0
    %v1533 = vpop.f32.mrf.mxu0
    %v1534 = vadd.f32 %v1394, %v1533
    %v1535 = vpop.f32.mrf.mxu0
    %1536 = vmatprep.mubr.bf16.mxu0 %v1466
    %1537 = vmatmul.mubr.bf16.gmra.mxu0 %v1359
    %v1538 = vpop.f32.mrf.mxu0
    %v1539 = vadd.f32 %v1394, %v1538
    %v1540 = vpop.f32.mrf.mxu0
    %v1541 = vpop.f32.mrf.mxu0
    %v1542 = vadd.f32 %v1394, %v1541
    %v1543 = vpop.f32.mrf.mxu0
    %1544 = vmatprep.mubr.bf16.mxu0 %v1469
    %1545 = vmatmul.mubr.bf16.gmra.mxu0 %v1361
    %v1546 = vpop.f32.mrf.mxu0
    %v1547 = vadd.f32 %v1394, %v1546
    %v1548 = vpop.f32.mrf.mxu0
    %v1549 = vpop.f32.mrf.mxu0
    %v1550 = vadd.f32 %v1394, %v1549
    %v1551 = vpop.f32.mrf.mxu0
    %1552 = vmatprep.mubr.bf16.mxu0 %v1472
    %1553 = vmatmul.mubr.bf16.gmra.mxu0 %v1363
    %v1554 = vpop.f32.mrf.mxu0
    %v1555 = vadd.f32 %v1394, %v1554
    %v1556 = vpop.f32.mrf.mxu0
    %v1557 = vpop.f32.mrf.mxu0
    %v1558 = vadd.f32 %v1394, %v1557
    %v1559 = vpop.f32.mrf.mxu0
    %1560 = vmatprep.mubr.bf16.mxu0 %v1475
    %1561 = vmatmul.mubr.bf16.gmra.mxu0 %v1365
    %v1562 = vpop.f32.mrf.mxu0
    %v1563 = vadd.f32 %v1394, %v1562
    %v1564 = vpop.f32.mrf.mxu0
    %v1565 = vpop.f32.mrf.mxu0
    %v1566 = vadd.f32 %v1394, %v1565
    %v1567 = vpop.f32.mrf.mxu0
    %1568 = vmatprep.mubr.bf16.mxu0 %v1478
    %1569 = vmatmul.mubr.bf16.gmra.mxu0 %v1367
    %v1570 = vpop.f32.mrf.mxu0
    %v1571 = vadd.f32 %v1394, %v1570
    %v1572 = vpop.f32.mrf.mxu0
    %v1573 = vpop.f32.mrf.mxu0
    %v1574 = vadd.f32 %v1394, %v1573
    %v1575 = vpop.f32.mrf.mxu0
    %1576 = vdwg.mxu0
    %1577 = vmax.xlane.f32.xlu0 %v1515
    %v1578 = vpop.xlane.xlu0 %1577
    %1579 = vmax.xlane.f32.xlu0 %v1518
    %v1580 = vpop.xlane.xlu0 %1579
    %1581 = vmax.xlane.f32.xlu0 %v1523
    %v1582 = vpop.xlane.xlu0 %1581
    %1583 = vmax.xlane.f32.xlu0 %v1526
    %v1584 = vpop.xlane.xlu0 %1583
    %1585 = vmax.xlane.f32.xlu0 %v1531
    %v1586 = vpop.xlane.xlu0 %1585
    %1587 = vmax.xlane.f32.xlu0 %v1534
    %v1588 = vpop.xlane.xlu0 %1587
    %1589 = vmax.xlane.f32.xlu0 %v1539
    %v1590 = vpop.xlane.xlu0 %1589
    %1591 = vmax.xlane.f32.xlu0 %v1542
    %v1592 = vpop.xlane.xlu0 %1591
    %1593 = vmax.xlane.f32.xlu0 %v1547
    %v1594 = vpop.xlane.xlu0 %1593
    %1595 = vmax.xlane.f32.xlu0 %v1550
    %v1596 = vpop.xlane.xlu0 %1595
    %1597 = vmax.xlane.f32.xlu0 %v1555
    %v1598 = vpop.xlane.xlu0 %1597
    %1599 = vmax.xlane.f32.xlu0 %v1558
    %v1600 = vpop.xlane.xlu0 %1599
    %1601 = vmax.xlane.f32.xlu0 %v1563
    %v1602 = vpop.xlane.xlu0 %1601
    %1603 = vmax.xlane.f32.xlu0 %v1566
    %v1604 = vpop.xlane.xlu0 %1603
    %1605 = vmax.xlane.f32.xlu0 %v1571
    %v1606 = vpop.xlane.xlu0 %1605
    %1607 = vmax.xlane.f32.xlu0 %v1574
    %v1608 = vpop.xlane.xlu0 %1607
    %v1609 = vsub.f32 %v1515, %v1578
    %v1610 = vsub.f32 %v1518, %v1580
    %v1611 = vsub.f32 %v1523, %v1582
    %v1612 = vsub.f32 %v1526, %v1584
    %v1613 = vsub.f32 %v1531, %v1586
    %v1614 = vsub.f32 %v1534, %v1588
    %v1615 = vsub.f32 %v1539, %v1590
    %v1616 = vsub.f32 %v1542, %v1592
    %v1617 = vsub.f32 %v1547, %v1594
    %v1618 = vsub.f32 %v1550, %v1596
    %v1619 = vsub.f32 %v1555, %v1598
    %v1620 = vsub.f32 %v1558, %v1600
    %v1621 = vsub.f32 %v1563, %v1602
    %v1622 = vsub.f32 %v1566, %v1604
    %v1623 = vsub.f32 %v1571, %v1606
    %v1624 = vsub.f32 %v1574, %v1608
    %v1625 = vmul.f32 %v1609, 1.442695
    %v1626 = vpow.pop %v1625
    %v1627 = vmul.f32 %v1610, 1.442695
    %v1628 = vpow.pop %v1627
    %v1629 = vmul.f32 %v1611, 1.442695
    %v1630 = vpow.pop %v1629
    %v1631 = vmul.f32 %v1612, 1.442695
    %v1632 = vpow.pop %v1631
    %v1633 = vmul.f32 %v1613, 1.442695
    %v1634 = vpow.pop %v1633
    %v1635 = vmul.f32 %v1614, 1.442695
    %v1636 = vpow.pop %v1635
    %v1637 = vmul.f32 %v1615, 1.442695
    %v1638 = vpow.pop %v1637
    %v1639 = vmul.f32 %v1616, 1.442695
    %v1640 = vpow.pop %v1639
    %v1641 = vmul.f32 %v1617, 1.442695
    %v1642 = vpow.pop %v1641
    %v1643 = vmul.f32 %v1618, 1.442695
    %v1644 = vpow.pop %v1643
    %v1645 = vmul.f32 %v1619, 1.442695
    %v1646 = vpow.pop %v1645
    %v1647 = vmul.f32 %v1620, 1.442695
    %v1648 = vpow.pop %v1647
    %v1649 = vmul.f32 %v1621, 1.442695
    %v1650 = vpow.pop %v1649
    %v1651 = vmul.f32 %v1622, 1.442695
    %v1652 = vpow.pop %v1651
    %v1653 = vmul.f32 %v1623, 1.442695
    %v1654 = vpow.pop %v1653
    %v1655 = vmul.f32 %v1624, 1.442695
    %v1656 = vpow.pop %v1655
    %1657 = vadd.xlane.f32.xlu0 %v1626
    %v1658 = vpop.xlane.xlu0 %1657
    %1659 = vadd.xlane.f32.xlu0 %v1628
    %v1660 = vpop.xlane.xlu0 %1659
    %1661 = vadd.xlane.f32.xlu0 %v1630
    %v1662 = vpop.xlane.xlu0 %1661
    %1663 = vadd.xlane.f32.xlu0 %v1632
    %v1664 = vpop.xlane.xlu0 %1663
    %1665 = vadd.xlane.f32.xlu0 %v1634
    %v1666 = vpop.xlane.xlu0 %1665
    %1667 = vadd.xlane.f32.xlu0 %v1636
    %v1668 = vpop.xlane.xlu0 %1667
    %1669 = vadd.xlane.f32.xlu0 %v1638
    %v1670 = vpop.xlane.xlu0 %1669
    %1671 = vadd.xlane.f32.xlu0 %v1640
    %v1672 = vpop.xlane.xlu0 %1671
    %1673 = vadd.xlane.f32.xlu0 %v1642
    %v1674 = vpop.xlane.xlu0 %1673
    %1675 = vadd.xlane.f32.xlu0 %v1644
    %v1676 = vpop.xlane.xlu0 %1675
    %1677 = vadd.xlane.f32.xlu0 %v1646
    %v1678 = vpop.xlane.xlu0 %1677
    %1679 = vadd.xlane.f32.xlu0 %v1648
    %v1680 = vpop.xlane.xlu0 %1679
    %1681 = vadd.xlane.f32.xlu0 %v1650
    %v1682 = vpop.xlane.xlu0 %1681
    %1683 = vadd.xlane.f32.xlu0 %v1652
    %v1684 = vpop.xlane.xlu0 %1683
    %1685 = vadd.xlane.f32.xlu0 %v1654
    %v1686 = vpop.xlane.xlu0 %1685
    %1687 = vadd.xlane.f32.xlu0 %v1656
    %v1688 = vpop.xlane.xlu0 %1687
    %v1689 = vrcp.pop %v1658
    %v1690 = vrcp.pop %v1660
    %v1691 = vrcp.pop %v1662
    %v1692 = vrcp.pop %v1664
    %v1693 = vrcp.pop %v1666
    %v1694 = vrcp.pop %v1668
    %v1695 = vrcp.pop %v1670
    %v1696 = vrcp.pop %v1672
    %v1697 = vrcp.pop %v1674
    %v1698 = vrcp.pop %v1676
    %v1699 = vrcp.pop %v1678
    %v1700 = vrcp.pop %v1680
    %v1701 = vrcp.pop %v1682
    %v1702 = vrcp.pop %v1684
    %v1703 = vrcp.pop %v1686
    %v1704 = vrcp.pop %v1688
    %v1705 = vmul.f32 %v1626, %v1689
    %v1706 = vmul.f32 %v1628, %v1690
    %v1707 = vmul.f32 %v1630, %v1691
    %v1708 = vmul.f32 %v1632, %v1692
    %v1709 = vmul.f32 %v1634, %v1693
    %v1710 = vmul.f32 %v1636, %v1694
    %v1711 = vmul.f32 %v1638, %v1695
    %v1712 = vmul.f32 %v1640, %v1696
    %v1713 = vmul.f32 %v1642, %v1697
    %v1714 = vmul.f32 %v1644, %v1698
    %v1715 = vmul.f32 %v1646, %v1699
    %v1716 = vmul.f32 %v1648, %v1700
    %v1717 = vmul.f32 %v1650, %v1701
    %v1718 = vmul.f32 %v1652, %v1702
    %v1719 = vmul.f32 %v1654, %v1703
    %v1720 = vmul.f32 %v1656, %v1704
    %v1721 = vld [vmem:[%s9] sm:$0xff]
    %v1722 = vld [vmem:[%s9 + $0x8] sm:$0xff]
    %v1723 = vld [vmem:[%s10] sm:$0x3]
    %v1725 = vlaneseq
    %v1726 = vshrl.u32 %v1725, 7
    %v1727 = vsub.s32 0, %v1726
    %v1728 = vrot.slane %v1723, %v1727
    %v1729 = vlaneseq
    %v1730 = vshrl.u32 %v1729, 7
    %v1731 = vsub.s32 1, %v1730
    %v1732 = vrot.slane %v1723, %v1731
    %v1737 = vunpack.c.l.b16 %v1721
    %v1738 = vunpack.c.h.b16 %v1721
    %v1739 = vunpack.c.l.b16 %v1722
    %v1740 = vunpack.c.h.b16 %v1722
    %v1741 = vpack.c.b16 %v1739, %v1737
    %v1742 = vpack.c.b16 %v1740, %v1738
    %1745 = vmatprep.subr.bf16.mxu0 0
    %1746 = vmatpush1.bf16.msra.mxu0 0
    %1747 = vmatprep.subr.bf16.mxu0 0
    %1748 = vmatpush1.bf16.msra.mxu0 0
    %1749 = vmatprep.subr.bf16.mxu0 0
    %1750 = vmatpush1.bf16.msra.mxu0 0
    %1751 = vmatprep.subr.bf16.mxu0 0
    %1752 = vmatpush1.bf16.msra.mxu0 0
    %1753 = vmatprep.subr.bf16.mxu0 0
    %1754 = vmatpush1.bf16.msra.mxu0 0
    %1755 = vmatprep.subr.bf16.mxu0 0
    %1756 = vmatpush1.bf16.msra.mxu0 0
    %1757 = vmatprep.subr.bf16.mxu0 0
    %1758 = vmatpush1.bf16.msra.mxu0 0
    %1759 = vmatprep.subr.bf16.mxu0 %v1742
    %1760 = vmatpush1.bf16.msra.mxu0 %v1741
    %1761 = vmatprep.subr.bf16.mxu0 0
    %1762 = vmatpush2.bf16.msra.mxu0 0
    %1763 = vmatprep.subr.bf16.mxu0 0
    %1764 = vmatpush2.bf16.msra.mxu0 0
    %1765 = vmatprep.subr.bf16.mxu0 0
    %1766 = vmatpush2.bf16.msra.mxu0 0
    %1767 = vmatprep.subr.bf16.mxu0 0
    %1768 = vmatpush2.bf16.msra.mxu0 0
    %1769 = vmatprep.subr.bf16.mxu0 0
    %1770 = vmatpush2.bf16.msra.mxu0 0
    %1771 = vmatprep.subr.bf16.mxu0 0
    %1772 = vmatpush2.bf16.msra.mxu0 0
    %1773 = vmatprep.subr.bf16.mxu0 0
    %1774 = vmatpush2.bf16.msra.mxu0 0
    %1775 = vmatprep.subr.bf16.mxu0 0
    %1776 = vmatpush2.bf16.msra.mxu0 0
    %1777 = vmatprep.mubr.bf16.mxu0 0
    %1778 = vmatmul.mubr.bf16.gmra.mxu0 %v110
    %v1779 = vpop.f32.mrf.mxu0
    %v1780 = vadd.f32 %v1728, %v1779
    %v1781 = vpop.f32.mrf.mxu0
    %v1782 = vadd.f32 %v1732, %v1781
    %v1783 = vpop.f32.mrf.mxu0
    %v1784 = vadd.f32 %v1728, %v1783
    %v1785 = vpop.f32.mrf.mxu0
    %v1786 = vadd.f32 %v1732, %v1785
    %1787 = vmatprep.mubr.bf16.mxu0 0
    %1788 = vmatmul.mubr.bf16.gmra.mxu0 %v113
    %v1789 = vpop.f32.mrf.mxu0
    %v1790 = vadd.f32 %v1728, %v1789
    %v1791 = vpop.f32.mrf.mxu0
    %v1792 = vadd.f32 %v1732, %v1791
    %v1793 = vpop.f32.mrf.mxu0
    %v1794 = vadd.f32 %v1728, %v1793
    %v1795 = vpop.f32.mrf.mxu0
    %v1796 = vadd.f32 %v1732, %v1795
    %1797 = vmatprep.mubr.bf16.mxu0 0
    %1798 = vmatmul.mubr.bf16.gmra.mxu0 %v116
    %v1799 = vpop.f32.mrf.mxu0
    %v1800 = vadd.f32 %v1728, %v1799
    %v1801 = vpop.f32.mrf.mxu0
    %v1802 = vadd.f32 %v1732, %v1801
    %v1803 = vpop.f32.mrf.mxu0
    %v1804 = vadd.f32 %v1728, %v1803
    %v1805 = vpop.f32.mrf.mxu0
    %v1806 = vadd.f32 %v1732, %v1805
    %1807 = vmatprep.mubr.bf16.mxu0 0
    %1808 = vmatmul.mubr.bf16.gmra.mxu0 %v119
    %v1809 = vpop.f32.mrf.mxu0
    %v1810 = vadd.f32 %v1728, %v1809
    %v1811 = vpop.f32.mrf.mxu0
    %v1812 = vadd.f32 %v1732, %v1811
    %v1813 = vpop.f32.mrf.mxu0
    %v1814 = vadd.f32 %v1728, %v1813
    %v1815 = vpop.f32.mrf.mxu0
    %v1816 = vadd.f32 %v1732, %v1815
    %1817 = vmatprep.mubr.bf16.mxu0 0
    %1818 = vmatmul.mubr.bf16.gmra.mxu0 %v122
    %v1819 = vpop.f32.mrf.mxu0
    %v1820 = vadd.f32 %v1728, %v1819
    %v1821 = vpop.f32.mrf.mxu0
    %v1822 = vadd.f32 %v1732, %v1821
    %v1823 = vpop.f32.mrf.mxu0
    %v1824 = vadd.f32 %v1728, %v1823
    %v1825 = vpop.f32.mrf.mxu0
    %v1826 = vadd.f32 %v1732, %v1825
    %1827 = vmatprep.mubr.bf16.mxu0 0
    %1828 = vmatmul.mubr.bf16.gmra.mxu0 %v125
    %v1829 = vpop.f32.mrf.mxu0
    %v1830 = vadd.f32 %v1728, %v1829
    %v1831 = vpop.f32.mrf.mxu0
    %v1832 = vadd.f32 %v1732, %v1831
    %v1833 = vpop.f32.mrf.mxu0
    %v1834 = vadd.f32 %v1728, %v1833
    %v1835 = vpop.f32.mrf.mxu0
    %v1836 = vadd.f32 %v1732, %v1835
    %1837 = vmatprep.mubr.bf16.mxu0 0
    %1838 = vmatmul.mubr.bf16.gmra.mxu0 %v128
    %v1839 = vpop.f32.mrf.mxu0
    %v1840 = vadd.f32 %v1728, %v1839
    %v1841 = vpop.f32.mrf.mxu0
    %v1842 = vadd.f32 %v1732, %v1841
    %v1843 = vpop.f32.mrf.mxu0
    %v1844 = vadd.f32 %v1728, %v1843
    %v1845 = vpop.f32.mrf.mxu0
    %v1846 = vadd.f32 %v1732, %v1845
    %1847 = vmatprep.mubr.bf16.mxu0 0
    %1848 = vmatmul.mubr.bf16.gmra.mxu0 %v131
    %v1849 = vpop.f32.mrf.mxu0
    %v1850 = vadd.f32 %v1728, %v1849
    %v1851 = vpop.f32.mrf.mxu0
    %v1852 = vadd.f32 %v1732, %v1851
    %v1853 = vpop.f32.mrf.mxu0
    %v1854 = vadd.f32 %v1728, %v1853
    %v1855 = vpop.f32.mrf.mxu0
    %v1856 = vadd.f32 %v1732, %v1855
    %1857 = vdwg.mxu0
    %v1858 = vmax.f32 %v1780, 0.0
    %v1859 = vmax.f32 %v1782, 0.0
    %v1860 = vmax.f32 %v1784, 0.0
    %v1861 = vmax.f32 %v1786, 0.0
    %v1862 = vmax.f32 %v1790, 0.0
    %v1863 = vmax.f32 %v1792, 0.0
    %v1864 = vmax.f32 %v1794, 0.0
    %v1865 = vmax.f32 %v1796, 0.0
    %v1866 = vmax.f32 %v1800, 0.0
    %v1867 = vmax.f32 %v1802, 0.0
    %v1868 = vmax.f32 %v1804, 0.0
    %v1869 = vmax.f32 %v1806, 0.0
    %v1870 = vmax.f32 %v1810, 0.0
    %v1871 = vmax.f32 %v1812, 0.0
    %v1872 = vmax.f32 %v1814, 0.0
    %v1873 = vmax.f32 %v1816, 0.0
    %v1874 = vmax.f32 %v1820, 0.0
    %v1875 = vmax.f32 %v1822, 0.0
    %v1876 = vmax.f32 %v1824, 0.0
    %v1877 = vmax.f32 %v1826, 0.0
    %v1878 = vmax.f32 %v1830, 0.0
    %v1879 = vmax.f32 %v1832, 0.0
    %v1880 = vmax.f32 %v1834, 0.0
    %v1881 = vmax.f32 %v1836, 0.0
    %v1882 = vmax.f32 %v1840, 0.0
    %v1883 = vmax.f32 %v1842, 0.0
    %v1884 = vmax.f32 %v1844, 0.0
    %v1885 = vmax.f32 %v1846, 0.0
    %v1886 = vmax.f32 %v1850, 0.0
    %v1887 = vmax.f32 %v1852, 0.0
    %v1888 = vmax.f32 %v1854, 0.0
    %v1889 = vmax.f32 %v1856, 0.0
    %v1890 = vpack.c.bf16 %v1860, %v1858
    %v1891 = vpack.c.bf16 %v1861, %v1859
    %v1892 = vpack.c.bf16 %v1864, %v1862
    %v1893 = vpack.c.bf16 %v1865, %v1863
    %v1894 = vpack.c.bf16 %v1868, %v1866
    %v1895 = vpack.c.bf16 %v1869, %v1867
    %v1896 = vpack.c.bf16 %v1872, %v1870
    %v1897 = vpack.c.bf16 %v1873, %v1871
    %v1898 = vpack.c.bf16 %v1876, %v1874
    %v1899 = vpack.c.bf16 %v1877, %v1875
    %v1900 = vpack.c.bf16 %v1880, %v1878
    %v1901 = vpack.c.bf16 %v1881, %v1879
    %v1902 = vpack.c.bf16 %v1884, %v1882
    %v1903 = vpack.c.bf16 %v1885, %v1883
    %v1904 = vpack.c.bf16 %v1888, %v1886
    %v1905 = vpack.c.bf16 %v1889, %v1887
    %v1906 = vld [vmem:[%s11] sm:$0xff]
    %v1907 = vld [vmem:[%s11 + $0x8] sm:$0xf]
    %v1908 = vld [vmem:[%s11 + $0xc] sm:$0xff]
    %v1909 = vld [vmem:[%s11 + $0x14] sm:$0xf]
    %v1910 = vld [vmem:[%s11 + $0x18] sm:$0xff]
    %v1911 = vld [vmem:[%s11 + $0x20] sm:$0xf]
    %v1912 = vld [vmem:[%s11 + $0x24] sm:$0xff]
    %v1913 = vld [vmem:[%s11 + $0x2c] sm:$0xf]
    %v1914 = vld [vmem:[%s11 + $0x30] sm:$0xff]
    %v1915 = vld [vmem:[%s11 + $0x38] sm:$0xf]
    %v1916 = vld [vmem:[%s11 + $0x3c] sm:$0xff]
    %v1917 = vld [vmem:[%s11 + $0x44] sm:$0xf]
    %v1918 = vld [vmem:[%s11 + $0x48] sm:$0xff]
    %v1919 = vld [vmem:[%s11 + $0x50] sm:$0xf]
    %v1920 = vld [vmem:[%s11 + $0x54] sm:$0xff]
    %v1921 = vld [vmem:[%s11 + $0x5c] sm:$0xf]
    %v1922 = vld [vmem:[%s11 + $0x60] sm:$0xff]
    %v1923 = vld [vmem:[%s11 + $0x68] sm:$0xf]
    %v1924 = vld [vmem:[%s11 + $0x6c] sm:$0xff]
    %v1925 = vld [vmem:[%s11 + $0x74] sm:$0xf]
    %v1926 = vld [vmem:[%s11 + $0x78] sm:$0xff]
    %v1927 = vld [vmem:[%s11 + $0x80] sm:$0xf]
    %v1928 = vld [vmem:[%s11 + $0x84] sm:$0xff]
    %v1929 = vld [vmem:[%s11 + $0x8c] sm:$0xf]
    %v1930 = vld [vmem:[%s11 + $0x90] sm:$0xff]
    %v1931 = vld [vmem:[%s11 + $0x98] sm:$0xf]
    %v1932 = vld [vmem:[%s11 + $0x9c] sm:$0xff]
    %v1933 = vld [vmem:[%s11 + $0xa4] sm:$0xf]
    %v1934 = vld [vmem:[%s11 + $0xa8] sm:$0xff]
    %v1935 = vld [vmem:[%s11 + $0xb0] sm:$0xf]
    %v1936 = vld [vmem:[%s11 + $0xb4] sm:$0xff]
    %v1937 = vld [vmem:[%s11 + $0xbc] sm:$0xf]
    %v1938 = vld [vmem:[%s11 + $0xc0] sm:$0xff]
    %v1939 = vld [vmem:[%s11 + $0xc8] sm:$0xf]
    %v1940 = vld [vmem:[%s11 + $0xcc] sm:$0xff]
    %v1941 = vld [vmem:[%s11 + $0xd4] sm:$0xf]
    %v1942 = vld [vmem:[%s11 + $0xd8] sm:$0xff]
    %v1943 = vld [vmem:[%s11 + $0xe0] sm:$0xf]
    %v1944 = vld [vmem:[%s11 + $0xe4] sm:$0xff]
    %v1945 = vld [vmem:[%s11 + $0xec] sm:$0xf]
    %v1946 = vld [vmem:[%s12] sm:$0x7]
    %v1948 = vlaneseq
    %v1949 = vshrl.u32 %v1948, 7
    %v1950 = vsub.s32 0, %v1949
    %v1951 = vrot.slane %v1946, %v1950
    %v1952 = vlaneseq
    %v1953 = vshrl.u32 %v1952, 7
    %v1954 = vsub.s32 1, %v1953
    %v1955 = vrot.slane %v1946, %v1954
    %v1956 = vlaneseq
    %v1957 = vshrl.u32 %v1956, 7
    %v1958 = vsub.s32 2, %v1957
    %v1959 = vrot.slane %v1946, %v1958
    %v2003 = vunpack.c.l.b16 %v1906
    %v2004 = vunpack.c.h.b16 %v1906
    %v2005 = vunpack.c.l.b16 %v1907
    %v2006 = vunpack.c.l.b16 %v1908
    %v2007 = vunpack.c.h.b16 %v1908
    %v2008 = vunpack.c.l.b16 %v1909
    %v2009 = vunpack.c.l.b16 %v1910
    %v2010 = vunpack.c.h.b16 %v1910
    %v2011 = vunpack.c.l.b16 %v1911
    %v2012 = vunpack.c.l.b16 %v1912
    %v2013 = vunpack.c.h.b16 %v1912
    %v2014 = vunpack.c.l.b16 %v1913
    %v2015 = vunpack.c.l.b16 %v1914
    %v2016 = vunpack.c.h.b16 %v1914
    %v2017 = vunpack.c.l.b16 %v1915
    %v2018 = vunpack.c.l.b16 %v1916
    %v2019 = vunpack.c.h.b16 %v1916
    %v2020 = vunpack.c.l.b16 %v1917
    %v2021 = vunpack.c.l.b16 %v1918
    %v2022 = vunpack.c.h.b16 %v1918
    %v2023 = vunpack.c.l.b16 %v1919
    %v2024 = vunpack.c.l.b16 %v1920
    %v2025 = vunpack.c.h.b16 %v1920
    %v2026 = vunpack.c.l.b16 %v1921
    %v2027 = vunpack.c.l.b16 %v1922
    %v2028 = vunpack.c.h.b16 %v1922
    %v2029 = vunpack.c.l.b16 %v1923
    %v2030 = vunpack.c.l.b16 %v1924
    %v2031 = vunpack.c.h.b16 %v1924
    %v2032 = vunpack.c.l.b16 %v1925
    %v2033 = vunpack.c.l.b16 %v1926
    %v2034 = vunpack.c.h.b16 %v1926
    %v2035 = vunpack.c.l.b16 %v1927
    %v2036 = vunpack.c.l.b16 %v1928
    %v2037 = vunpack.c.h.b16 %v1928
    %v2038 = vunpack.c.l.b16 %v1929
    %v2039 = vunpack.c.l.b16 %v1930
    %v2040 = vunpack.c.h.b16 %v1930
    %v2041 = vunpack.c.l.b16 %v1931
    %v2042 = vunpack.c.l.b16 %v1932
    %v2043 = vunpack.c.h.b16 %v1932
    %v2044 = vunpack.c.l.b16 %v1933
    %v2045 = vunpack.c.l.b16 %v1934
    %v2046 = vunpack.c.h.b16 %v1934
    %v2047 = vunpack.c.l.b16 %v1935
    %v2048 = vunpack.c.l.b16 %v1936
    %v2049 = vunpack.c.h.b16 %v1936
    %v2050 = vunpack.c.l.b16 %v1937
    %v2051 = vunpack.c.l.b16 %v1938
    %v2052 = vunpack.c.h.b16 %v1938
    %v2053 = vunpack.c.l.b16 %v1939
    %v2054 = vunpack.c.l.b16 %v1940
    %v2055 = vunpack.c.h.b16 %v1940
    %v2056 = vunpack.c.l.b16 %v1941
    %v2057 = vunpack.c.l.b16 %v1942
    %v2058 = vunpack.c.h.b16 %v1942
    %v2059 = vunpack.c.l.b16 %v1943
    %v2060 = vunpack.c.l.b16 %v1944
    %v2061 = vunpack.c.h.b16 %v1944
    %v2062 = vunpack.c.l.b16 %v1945
    %v2063 = vpack.c.b16 %v2006, %v2003
    %v2064 = vpack.c.b16 %v2007, %v2004
    %v2065 = vpack.c.b16 %v2008, %v2005
    %v2066 = vpack.c.b16 %v2012, %v2009
    %v2067 = vpack.c.b16 %v2013, %v2010
    %v2068 = vpack.c.b16 %v2014, %v2011
    %v2069 = vpack.c.b16 %v2018, %v2015
    %v2070 = vpack.c.b16 %v2019, %v2016
    %v2071 = vpack.c.b16 %v2020, %v2017
    %v2072 = vpack.c.b16 %v2024, %v2021
    %v2073 = vpack.c.b16 %v2025, %v2022
    %v2074 = vpack.c.b16 %v2026, %v2023
    %v2075 = vpack.c.b16 %v2030, %v2027
    %v2076 = vpack.c.b16 %v2031, %v2028
    %v2077 = vpack.c.b16 %v2032, %v2029
    %v2078 = vpack.c.b16 %v2036, %v2033
    %v2079 = vpack.c.b16 %v2037, %v2034
    %v2080 = vpack.c.b16 %v2038, %v2035
    %v2081 = vpack.c.b16 %v2042, %v2039
    %v2082 = vpack.c.b16 %v2043, %v2040
    %v2083 = vpack.c.b16 %v2044, %v2041
    %v2084 = vpack.c.b16 %v2048, %v2045
    %v2085 = vpack.c.b16 %v2049, %v2046
    %v2086 = vpack.c.b16 %v2050, %v2047
    %v2087 = vpack.c.b16 %v2054, %v2051
    %v2088 = vpack.c.b16 %v2055, %v2052
    %v2089 = vpack.c.b16 %v2056, %v2053
    %v2090 = vpack.c.b16 %v2060, %v2057
    %v2091 = vpack.c.b16 %v2061, %v2058
    %v2092 = vpack.c.b16 %v2062, %v2059
    %v2124 = vsel %vm511, %v1891, 0
    %v2127 = vsel %vm511, %v1893, 0
    %v2130 = vsel %vm511, %v1895, 0
    %v2133 = vsel %vm511, %v1897, 0
    %v2136 = vsel %vm511, %v1899, 0
    %v2139 = vsel %vm511, %v1901, 0
    %v2142 = vsel %vm511, %v1903, 0
    %v2145 = vsel %vm511, %v1905, 0
    %2147 = vmatprep.subr.bf16.mxu0 %v2085
    %2148 = vmatpush1.bf16.msra.mxu0 %v2084
    %2149 = vmatprep.subr.bf16.mxu0 %v2082
    %2150 = vmatpush1.bf16.msra.mxu0 %v2081
    %2151 = vmatprep.subr.bf16.mxu0 %v2079
    %2152 = vmatpush1.bf16.msra.mxu0 %v2078
    %2153 = vmatprep.subr.bf16.mxu0 %v2076
    %2154 = vmatpush1.bf16.msra.mxu0 %v2075
    %2155 = vmatprep.subr.bf16.mxu0 %v2073
    %2156 = vmatpush1.bf16.msra.mxu0 %v2072
    %2157 = vmatprep.subr.bf16.mxu0 %v2070
    %2158 = vmatpush1.bf16.msra.mxu0 %v2069
    %2159 = vmatprep.subr.bf16.mxu0 %v2067
    %2160 = vmatpush1.bf16.msra.mxu0 %v2066
    %2161 = vmatprep.subr.bf16.mxu0 %v2064
    %2162 = vmatpush1.bf16.msra.mxu0 %v2063
    %2163 = vmatprep.subr.bf16.mxu0 0
    %2164 = vmatpush2.bf16.msra.mxu0 0
    %2165 = vmatprep.subr.bf16.mxu0 0
    %2166 = vmatpush2.bf16.msra.mxu0 0
    %2167 = vmatprep.subr.bf16.mxu0 0
    %2168 = vmatpush2.bf16.msra.mxu0 0
    %2169 = vmatprep.subr.bf16.mxu0 0
    %2170 = vmatpush2.bf16.msra.mxu0 0
    %2171 = vmatprep.subr.bf16.mxu0 0
    %2172 = vmatpush2.bf16.msra.mxu0 0
    %2173 = vmatprep.subr.bf16.mxu0 0
    %2174 = vmatpush2.bf16.msra.mxu0 0
    %2175 = vmatprep.subr.bf16.mxu0 %v2091
    %2176 = vmatpush2.bf16.msra.mxu0 %v2090
    %2177 = vmatprep.subr.bf16.mxu0 %v2088
    %2178 = vmatpush2.bf16.msra.mxu0 %v2087
    %2179 = vmatprep.mubr.bf16.mxu0 %v2124
    %2180 = vmatmul.mubr.bf16.gmra.mxu0 %v1890
    %v2181 = vpop.f32.mrf.mxu0
    %v2182 = vadd.f32 %v1951, %v2181
    %v2183 = vpop.f32.mrf.mxu0
    %v2184 = vadd.f32 %v1955, %v2183
    %v2185 = vpop.f32.mrf.mxu0
    %v2186 = vadd.f32 %v1951, %v2185
    %v2187 = vpop.f32.mrf.mxu0
    %v2188 = vadd.f32 %v1955, %v2187
    %2189 = vmatprep.mubr.bf16.mxu0 %v2127
    %2190 = vmatmul.mubr.bf16.gmra.mxu0 %v1892
    %v2191 = vpop.f32.mrf.mxu0
    %v2192 = vadd.f32 %v1951, %v2191
    %v2193 = vpop.f32.mrf.mxu0
    %v2194 = vadd.f32 %v1955, %v2193
    %v2195 = vpop.f32.mrf.mxu0
    %v2196 = vadd.f32 %v1951, %v2195
    %v2197 = vpop.f32.mrf.mxu0
    %v2198 = vadd.f32 %v1955, %v2197
    %2199 = vmatprep.mubr.bf16.mxu0 %v2130
    %2200 = vmatmul.mubr.bf16.gmra.mxu0 %v1894
    %v2201 = vpop.f32.mrf.mxu0
    %v2202 = vadd.f32 %v1951, %v2201
    %v2203 = vpop.f32.mrf.mxu0
    %v2204 = vadd.f32 %v1955, %v2203
    %v2205 = vpop.f32.mrf.mxu0
    %v2206 = vadd.f32 %v1951, %v2205
    %v2207 = vpop.f32.mrf.mxu0
    %v2208 = vadd.f32 %v1955, %v2207
    %2209 = vmatprep.mubr.bf16.mxu0 %v2133
    %2210 = vmatmul.mubr.bf16.gmra.mxu0 %v1896
    %v2211 = vpop.f32.mrf.mxu0
    %v2212 = vadd.f32 %v1951, %v2211
    %v2213 = vpop.f32.mrf.mxu0
    %v2214 = vadd.f32 %v1955, %v2213
    %v2215 = vpop.f32.mrf.mxu0
    %v2216 = vadd.f32 %v1951, %v2215
    %v2217 = vpop.f32.mrf.mxu0
    %v2218 = vadd.f32 %v1955, %v2217
    %2219 = vmatprep.mubr.bf16.mxu0 %v2136
    %2220 = vmatmul.mubr.bf16.gmra.mxu0 %v1898
    %v2221 = vpop.f32.mrf.mxu0
    %v2222 = vadd.f32 %v1951, %v2221
    %v2223 = vpop.f32.mrf.mxu0
    %v2224 = vadd.f32 %v1955, %v2223
    %v2225 = vpop.f32.mrf.mxu0
    %v2226 = vadd.f32 %v1951, %v2225
    %v2227 = vpop.f32.mrf.mxu0
    %v2228 = vadd.f32 %v1955, %v2227
    %2229 = vmatprep.mubr.bf16.mxu0 %v2139
    %2230 = vmatmul.mubr.bf16.gmra.mxu0 %v1900
    %v2231 = vpop.f32.mrf.mxu0
    %v2232 = vadd.f32 %v1951, %v2231
    %v2233 = vpop.f32.mrf.mxu0
    %v2234 = vadd.f32 %v1955, %v2233
    %v2235 = vpop.f32.mrf.mxu0
    %v2236 = vadd.f32 %v1951, %v2235
    %v2237 = vpop.f32.mrf.mxu0
    %v2238 = vadd.f32 %v1955, %v2237
    %2239 = vmatprep.mubr.bf16.mxu0 %v2142
    %2240 = vmatmul.mubr.bf16.gmra.mxu0 %v1902
    %v2241 = vpop.f32.mrf.mxu0
    %v2242 = vadd.f32 %v1951, %v2241
    %v2243 = vpop.f32.mrf.mxu0
    %v2244 = vadd.f32 %v1955, %v2243
    %v2245 = vpop.f32.mrf.mxu0
    %v2246 = vadd.f32 %v1951, %v2245
    %v2247 = vpop.f32.mrf.mxu0
    %v2248 = vadd.f32 %v1955, %v2247
    %2249 = vmatprep.mubr.bf16.mxu0 %v2145
    %2250 = vmatmul.mubr.bf16.gmra.mxu0 %v1904
    %v2251 = vpop.f32.mrf.mxu0
    %v2252 = vadd.f32 %v1951, %v2251
    %v2253 = vpop.f32.mrf.mxu0
    %v2254 = vadd.f32 %v1955, %v2253
    %v2255 = vpop.f32.mrf.mxu0
    %v2256 = vadd.f32 %v1951, %v2255
    %v2257 = vpop.f32.mrf.mxu0
    %v2258 = vadd.f32 %v1955, %v2257
    %2259 = vdwg.mxu0
    %2260 = vmatprep.subr.bf16.mxu0 0
    %2261 = vmatpush1.bf16.msra.mxu0 %v2086
    %2262 = vmatprep.subr.bf16.mxu0 0
    %2263 = vmatpush1.bf16.msra.mxu0 %v2083
    %2264 = vmatprep.subr.bf16.mxu0 0
    %2265 = vmatpush1.bf16.msra.mxu0 %v2080
    %2266 = vmatprep.subr.bf16.mxu0 0
    %2267 = vmatpush1.bf16.msra.mxu0 %v2077
    %2268 = vmatprep.subr.bf16.mxu0 0
    %2269 = vmatpush1.bf16.msra.mxu0 %v2074
    %2270 = vmatprep.subr.bf16.mxu0 0
    %2271 = vmatpush1.bf16.msra.mxu0 %v2071
    %2272 = vmatprep.subr.bf16.mxu0 0
    %2273 = vmatpush1.bf16.msra.mxu0 %v2068
    %2274 = vmatprep.subr.bf16.mxu0 0
    %2275 = vmatpush1.bf16.msra.mxu0 %v2065
    %2276 = vmatprep.subr.bf16.mxu0 0
    %2277 = vmatpush2.bf16.msra.mxu0 0
    %2278 = vmatprep.subr.bf16.mxu0 0
    %2279 = vmatpush2.bf16.msra.mxu0 0
    %2280 = vmatprep.subr.bf16.mxu0 0
    %2281 = vmatpush2.bf16.msra.mxu0 0
    %2282 = vmatprep.subr.bf16.mxu0 0
    %2283 = vmatpush2.bf16.msra.mxu0 0
    %2284 = vmatprep.subr.bf16.mxu0 0
    %2285 = vmatpush2.bf16.msra.mxu0 0
    %2286 = vmatprep.subr.bf16.mxu0 0
    %2287 = vmatpush2.bf16.msra.mxu0 0
    %2288 = vmatprep.subr.bf16.mxu0 0
    %2289 = vmatpush2.bf16.msra.mxu0 %v2092
    %2290 = vmatprep.subr.bf16.mxu0 0
    %2291 = vmatpush2.bf16.msra.mxu0 %v2089
    %2292 = vmatprep.mubr.bf16.mxu0 %v2124
    %2293 = vmatmul.mubr.bf16.gmra.mxu0 %v1890
    %v2294 = vpop.f32.mrf.mxu0
    %v2295 = vadd.f32 %v1959, %v2294
    %v2296 = vpop.f32.mrf.mxu0
    %v2297 = vpop.f32.mrf.mxu0
    %v2298 = vadd.f32 %v1959, %v2297
    %v2299 = vpop.f32.mrf.mxu0
    %2300 = vmatprep.mubr.bf16.mxu0 %v2127
    %2301 = vmatmul.mubr.bf16.gmra.mxu0 %v1892
    %v2302 = vpop.f32.mrf.mxu0
    %v2303 = vadd.f32 %v1959, %v2302
    %v2304 = vpop.f32.mrf.mxu0
    %v2305 = vpop.f32.mrf.mxu0
    %v2306 = vadd.f32 %v1959, %v2305
    %v2307 = vpop.f32.mrf.mxu0
    %2308 = vmatprep.mubr.bf16.mxu0 %v2130
    %2309 = vmatmul.mubr.bf16.gmra.mxu0 %v1894
    %v2310 = vpop.f32.mrf.mxu0
    %v2311 = vadd.f32 %v1959, %v2310
    %v2312 = vpop.f32.mrf.mxu0
    %v2313 = vpop.f32.mrf.mxu0
    %v2314 = vadd.f32 %v1959, %v2313
    %v2315 = vpop.f32.mrf.mxu0
    %2316 = vmatprep.mubr.bf16.mxu0 %v2133
    %2317 = vmatmul.mubr.bf16.gmra.mxu0 %v1896
    %v2318 = vpop.f32.mrf.mxu0
    %v2319 = vadd.f32 %v1959, %v2318
    %v2320 = vpop.f32.mrf.mxu0
    %v2321 = vpop.f32.mrf.mxu0
    %v2322 = vadd.f32 %v1959, %v2321
    %v2323 = vpop.f32.mrf.mxu0
    %2324 = vmatprep.mubr.bf16.mxu0 %v2136
    %2325 = vmatmul.mubr.bf16.gmra.mxu0 %v1898
    %v2326 = vpop.f32.mrf.mxu0
    %v2327 = vadd.f32 %v1959, %v2326
    %v2328 = vpop.f32.mrf.mxu0
    %v2329 = vpop.f32.mrf.mxu0
    %v2330 = vadd.f32 %v1959, %v2329
    %v2331 = vpop.f32.mrf.mxu0
    %2332 = vmatprep.mubr.bf16.mxu0 %v2139
    %2333 = vmatmul.mubr.bf16.gmra.mxu0 %v1900
    %v2334 = vpop.f32.mrf.mxu0
    %v2335 = vadd.f32 %v1959, %v2334
    %v2336 = vpop.f32.mrf.mxu0
    %v2337 = vpop.f32.mrf.mxu0
    %v2338 = vadd.f32 %v1959, %v2337
    %v2339 = vpop.f32.mrf.mxu0
    %2340 = vmatprep.mubr.bf16.mxu0 %v2142
    %2341 = vmatmul.mubr.bf16.gmra.mxu0 %v1902
    %v2342 = vpop.f32.mrf.mxu0
    %v2343 = vadd.f32 %v1959, %v2342
    %v2344 = vpop.f32.mrf.mxu0
    %v2345 = vpop.f32.mrf.mxu0
    %v2346 = vadd.f32 %v1959, %v2345
    %v2347 = vpop.f32.mrf.mxu0
    %2348 = vmatprep.mubr.bf16.mxu0 %v2145
    %2349 = vmatmul.mubr.bf16.gmra.mxu0 %v1904
    %v2350 = vpop.f32.mrf.mxu0
    %v2351 = vadd.f32 %v1959, %v2350
    %v2352 = vpop.f32.mrf.mxu0
    %v2353 = vpop.f32.mrf.mxu0
    %v2354 = vadd.f32 %v1959, %v2353
    %v2355 = vpop.f32.mrf.mxu0
    %2356 = vdwg.mxu0
    %v2357 = vmax.f32 %v2182, 0.0
    %v2358 = vmax.f32 %v2184, 0.0
    %v2359 = vmax.f32 %v2295, 0.0
    %v2360 = vmax.f32 %v2186, 0.0
    %v2361 = vmax.f32 %v2188, 0.0
    %v2362 = vmax.f32 %v2298, 0.0
    %v2363 = vmax.f32 %v2192, 0.0
    %v2364 = vmax.f32 %v2194, 0.0
    %v2365 = vmax.f32 %v2303, 0.0
    %v2366 = vmax.f32 %v2196, 0.0
    %v2367 = vmax.f32 %v2198, 0.0
    %v2368 = vmax.f32 %v2306, 0.0
    %v2369 = vmax.f32 %v2202, 0.0
    %v2370 = vmax.f32 %v2204, 0.0
    %v2371 = vmax.f32 %v2311, 0.0
    %v2372 = vmax.f32 %v2206, 0.0
    %v2373 = vmax.f32 %v2208, 0.0
    %v2374 = vmax.f32 %v2314, 0.0
    %v2375 = vmax.f32 %v2212, 0.0
    %v2376 = vmax.f32 %v2214, 0.0
    %v2377 = vmax.f32 %v2319, 0.0
    %v2378 = vmax.f32 %v2216, 0.0
    %v2379 = vmax.f32 %v2218, 0.0
    %v2380 = vmax.f32 %v2322, 0.0
    %v2381 = vmax.f32 %v2222, 0.0
    %v2382 = vmax.f32 %v2224, 0.0
    %v2383 = vmax.f32 %v2327, 0.0
    %v2384 = vmax.f32 %v2226, 0.0
    %v2385 = vmax.f32 %v2228, 0.0
    %v2386 = vmax.f32 %v2330, 0.0
    %v2387 = vmax.f32 %v2232, 0.0
    %v2388 = vmax.f32 %v2234, 0.0
    %v2389 = vmax.f32 %v2335, 0.0
    %v2390 = vmax.f32 %v2236, 0.0
    %v2391 = vmax.f32 %v2238, 0.0
    %v2392 = vmax.f32 %v2338, 0.0
    %v2393 = vmax.f32 %v2242, 0.0
    %v2394 = vmax.f32 %v2244, 0.0
    %v2395 = vmax.f32 %v2343, 0.0
    %v2396 = vmax.f32 %v2246, 0.0
    %v2397 = vmax.f32 %v2248, 0.0
    %v2398 = vmax.f32 %v2346, 0.0
    %v2399 = vmax.f32 %v2252, 0.0
    %v2400 = vmax.f32 %v2254, 0.0
    %v2401 = vmax.f32 %v2351, 0.0
    %v2402 = vmax.f32 %v2256, 0.0
    %v2403 = vmax.f32 %v2258, 0.0
    %v2404 = vmax.f32 %v2354, 0.0
    %v2405 = vpack.c.bf16 %v2360, %v2357
    %v2406 = vpack.c.bf16 %v2361, %v2358
    %v2407 = vpack.c.bf16 %v2362, %v2359
    %v2408 = vpack.c.bf16 %v2366, %v2363
    %v2409 = vpack.c.bf16 %v2367, %v2364
    %v2410 = vpack.c.bf16 %v2368, %v2365
    %v2411 = vpack.c.bf16 %v2372, %v2369
    %v2412 = vpack.c.bf16 %v2373, %v2370
    %v2413 = vpack.c.bf16 %v2374, %v2371
    %v2414 = vpack.c.bf16 %v2378, %v2375
    %v2415 = vpack.c.bf16 %v2379, %v2376
    %v2416 = vpack.c.bf16 %v2380, %v2377
    %v2417 = vpack.c.bf16 %v2384, %v2381
    %v2418 = vpack.c.bf16 %v2385, %v2382
    %v2419 = vpack.c.bf16 %v2386, %v2383
    %v2420 = vpack.c.bf16 %v2390, %v2387
    %v2421 = vpack.c.bf16 %v2391, %v2388
    %v2422 = vpack.c.bf16 %v2392, %v2389
    %v2423 = vpack.c.bf16 %v2396, %v2393
    %v2424 = vpack.c.bf16 %v2397, %v2394
    %v2425 = vpack.c.bf16 %v2398, %v2395
    %v2426 = vpack.c.bf16 %v2402, %v2399
    %v2427 = vpack.c.bf16 %v2403, %v2400
    %v2428 = vpack.c.bf16 %v2404, %v2401
    %v2429 = vld [vmem:[%s13] sm:$0xff]
    %v2430 = vld [vmem:[%s13 + $0x8] sm:$0xff]
    %v2431 = vld [vmem:[%s13 + $0x10] sm:$0xff]
    %v2432 = vld [vmem:[%s13 + $0x18] sm:$0xff]
    %v2433 = vld [vmem:[%s13 + $0x20] sm:$0xff]
    %v2434 = vld [vmem:[%s13 + $0x28] sm:$0xff]
    %v2435 = vld [vmem:[%s13 + $0x30] sm:$0xff]
    %v2436 = vld [vmem:[%s13 + $0x38] sm:$0xff]
    %v2437 = vld [vmem:[%s13 + $0x40] sm:$0xff]
    %v2438 = vld [vmem:[%s13 + $0x48] sm:$0xff]
    %v2439 = vld [vmem:[%s13 + $0x50] sm:$0xff]
    %v2440 = vld [vmem:[%s13 + $0x58] sm:$0xff]
    %v2441 = vld [vmem:[%s13 + $0x60] sm:$0xff]
    %v2442 = vld [vmem:[%s13 + $0x68] sm:$0xff]
    %v2443 = vld [vmem:[%s13 + $0x70] sm:$0xff]
    %v2444 = vld [vmem:[%s13 + $0x78] sm:$0xff]
    %v2445 = vld [vmem:[%s13 + $0x80] sm:$0xff]
    %v2446 = vld [vmem:[%s13 + $0x88] sm:$0xff]
    %v2447 = vld [vmem:[%s13 + $0x90] sm:$0xff]
    %v2448 = vld [vmem:[%s13 + $0x98] sm:$0xff]
    %v2449 = vld [vmem:[%s13 + $0xa0] sm:$0xff]
    %v2450 = vld [vmem:[%s13 + $0xa8] sm:$0xff]
    %v2451 = vld [vmem:[%s13 + $0xb0] sm:$0xff]
    %v2452 = vld [vmem:[%s13 + $0xb8] sm:$0xff]
    %v2453 = vld [vmem:[%s13 + $0xc0] sm:$0xff]
    %v2454 = vld [vmem:[%s13 + $0xc8] sm:$0xff]
    %v2455 = vld [vmem:[%s13 + $0xd0] sm:$0xff]
    %v2456 = vld [vmem:[%s13 + $0xd8] sm:$0xff]
    %v2457 = vld [vmem:[%s13 + $0xe0] sm:$0xff]
    %v2458 = vld [vmem:[%s13 + $0xe8] sm:$0xff]
    %v2459 = vld [vmem:[%s13 + $0xf0] sm:$0xff]
    %v2460 = vld [vmem:[%s13 + $0xf8] sm:$0xff]
    %v2461 = vld [vmem:[%s13 + $0x100] sm:$0xff]
    %v2462 = vld [vmem:[%s13 + $0x108] sm:$0xff]
    %v2463 = vld [vmem:[%s13 + $0x110] sm:$0xff]
    %v2464 = vld [vmem:[%s13 + $0x118] sm:$0xff]
    %v2465 = vld [vmem:[%s13 + $0x120] sm:$0xff]
    %v2466 = vld [vmem:[%s13 + $0x128] sm:$0xff]
    %v2467 = vld [vmem:[%s13 + $0x130] sm:$0xff]
    %v2468 = vld [vmem:[%s13 + $0x138] sm:$0xff]
    %v2469 = vld [vmem:[%s14] sm:$0x3]
    %v2471 = vlaneseq
    %v2472 = vshrl.u32 %v2471, 7
    %v2473 = vsub.s32 0, %v2472
    %v2474 = vrot.slane %v2469, %v2473
    %v2475 = vlaneseq
    %v2476 = vshrl.u32 %v2475, 7
    %v2477 = vsub.s32 1, %v2476
    %v2478 = vrot.slane %v2469, %v2477
    %v2521 = vunpack.c.l.b16 %v2429
    %v2522 = vunpack.c.h.b16 %v2429
    %v2523 = vunpack.c.l.b16 %v2430
    %v2524 = vunpack.c.h.b16 %v2430
    %v2525 = vunpack.c.l.b16 %v2431
    %v2526 = vunpack.c.h.b16 %v2431
    %v2527 = vunpack.c.l.b16 %v2432
    %v2528 = vunpack.c.h.b16 %v2432
    %v2529 = vunpack.c.l.b16 %v2433
    %v2530 = vunpack.c.h.b16 %v2433
    %v2531 = vunpack.c.l.b16 %v2434
    %v2532 = vunpack.c.h.b16 %v2434
    %v2533 = vunpack.c.l.b16 %v2435
    %v2534 = vunpack.c.h.b16 %v2435
    %v2535 = vunpack.c.l.b16 %v2436
    %v2536 = vunpack.c.h.b16 %v2436
    %v2537 = vunpack.c.l.b16 %v2437
    %v2538 = vunpack.c.h.b16 %v2437
    %v2539 = vunpack.c.l.b16 %v2438
    %v2540 = vunpack.c.h.b16 %v2438
    %v2541 = vunpack.c.l.b16 %v2439
    %v2542 = vunpack.c.h.b16 %v2439
    %v2543 = vunpack.c.l.b16 %v2440
    %v2544 = vunpack.c.h.b16 %v2440
    %v2545 = vunpack.c.l.b16 %v2441
    %v2546 = vunpack.c.h.b16 %v2441
    %v2547 = vunpack.c.l.b16 %v2442
    %v2548 = vunpack.c.h.b16 %v2442
    %v2549 = vunpack.c.l.b16 %v2443
    %v2550 = vunpack.c.h.b16 %v2443
    %v2551 = vunpack.c.l.b16 %v2444
    %v2552 = vunpack.c.h.b16 %v2444
    %v2553 = vunpack.c.l.b16 %v2445
    %v2554 = vunpack.c.h.b16 %v2445
    %v2555 = vunpack.c.l.b16 %v2446
    %v2556 = vunpack.c.h.b16 %v2446
    %v2557 = vunpack.c.l.b16 %v2447
    %v2558 = vunpack.c.h.b16 %v2447
    %v2559 = vunpack.c.l.b16 %v2448
    %v2560 = vunpack.c.h.b16 %v2448
    %v2561 = vunpack.c.l.b16 %v2449
    %v2562 = vunpack.c.h.b16 %v2449
    %v2563 = vunpack.c.l.b16 %v2450
    %v2564 = vunpack.c.h.b16 %v2450
    %v2565 = vunpack.c.l.b16 %v2451
    %v2566 = vunpack.c.h.b16 %v2451
    %v2567 = vunpack.c.l.b16 %v2452
    %v2568 = vunpack.c.h.b16 %v2452
    %v2569 = vunpack.c.l.b16 %v2453
    %v2570 = vunpack.c.h.b16 %v2453
    %v2571 = vunpack.c.l.b16 %v2454
    %v2572 = vunpack.c.h.b16 %v2454
    %v2573 = vunpack.c.l.b16 %v2455
    %v2574 = vunpack.c.h.b16 %v2455
    %v2575 = vunpack.c.l.b16 %v2456
    %v2576 = vunpack.c.h.b16 %v2456
    %v2577 = vunpack.c.l.b16 %v2457
    %v2578 = vunpack.c.h.b16 %v2457
    %v2579 = vunpack.c.l.b16 %v2458
    %v2580 = vunpack.c.h.b16 %v2458
    %v2581 = vunpack.c.l.b16 %v2459
    %v2582 = vunpack.c.h.b16 %v2459
    %v2583 = vunpack.c.l.b16 %v2460
    %v2584 = vunpack.c.h.b16 %v2460
    %v2585 = vunpack.c.l.b16 %v2461
    %v2586 = vunpack.c.h.b16 %v2461
    %v2587 = vunpack.c.l.b16 %v2462
    %v2588 = vunpack.c.h.b16 %v2462
    %v2589 = vunpack.c.l.b16 %v2463
    %v2590 = vunpack.c.h.b16 %v2463
    %v2591 = vunpack.c.l.b16 %v2464
    %v2592 = vunpack.c.h.b16 %v2464
    %v2593 = vunpack.c.l.b16 %v2465
    %v2594 = vunpack.c.h.b16 %v2465
    %v2595 = vunpack.c.l.b16 %v2466
    %v2596 = vunpack.c.h.b16 %v2466
    %v2597 = vunpack.c.l.b16 %v2467
    %v2598 = vunpack.c.h.b16 %v2467
    %v2599 = vunpack.c.l.b16 %v2468
    %v2600 = vunpack.c.h.b16 %v2468
    %v2601 = vpack.c.b16 %v2523, %v2521
    %v2602 = vpack.c.b16 %v2524, %v2522
    %v2603 = vpack.c.b16 %v2527, %v2525
    %v2604 = vpack.c.b16 %v2528, %v2526
    %v2605 = vpack.c.b16 %v2531, %v2529
    %v2606 = vpack.c.b16 %v2532, %v2530
    %v2607 = vpack.c.b16 %v2535, %v2533
    %v2608 = vpack.c.b16 %v2536, %v2534
    %v2609 = vpack.c.b16 %v2539, %v2537
    %v2610 = vpack.c.b16 %v2540, %v2538
    %v2611 = vpack.c.b16 %v2543, %v2541
    %v2612 = vpack.c.b16 %v2544, %v2542
    %v2613 = vpack.c.b16 %v2547, %v2545
    %v2614 = vpack.c.b16 %v2548, %v2546
    %v2615 = vpack.c.b16 %v2551, %v2549
    %v2616 = vpack.c.b16 %v2552, %v2550
    %v2617 = vpack.c.b16 %v2555, %v2553
    %v2618 = vpack.c.b16 %v2556, %v2554
    %v2619 = vpack.c.b16 %v2559, %v2557
    %v2620 = vpack.c.b16 %v2560, %v2558
    %v2621 = vpack.c.b16 %v2563, %v2561
    %v2622 = vpack.c.b16 %v2564, %v2562
    %v2623 = vpack.c.b16 %v2567, %v2565
    %v2624 = vpack.c.b16 %v2568, %v2566
    %v2625 = vpack.c.b16 %v2571, %v2569
    %v2626 = vpack.c.b16 %v2572, %v2570
    %v2627 = vpack.c.b16 %v2575, %v2573
    %v2628 = vpack.c.b16 %v2576, %v2574
    %v2629 = vpack.c.b16 %v2579, %v2577
    %v2630 = vpack.c.b16 %v2580, %v2578
    %v2631 = vpack.c.b16 %v2583, %v2581
    %v2632 = vpack.c.b16 %v2584, %v2582
    %v2633 = vpack.c.b16 %v2587, %v2585
    %v2634 = vpack.c.b16 %v2588, %v2586
    %v2635 = vpack.c.b16 %v2591, %v2589
    %v2636 = vpack.c.b16 %v2592, %v2590
    %v2637 = vpack.c.b16 %v2595, %v2593
    %v2638 = vpack.c.b16 %v2596, %v2594
    %v2639 = vpack.c.b16 %v2599, %v2597
    %v2640 = vpack.c.b16 %v2600, %v2598
    %v2682 = vsel %vm1070, %v2407, 0
    %v2685 = vsel %vm1070, %v2410, 0
    %v2688 = vsel %vm1070, %v2413, 0
    %v2691 = vsel %vm1070, %v2416, 0
    %v2694 = vsel %vm1070, %v2419, 0
    %v2697 = vsel %vm1070, %v2422, 0
    %v2700 = vsel %vm1070, %v2425, 0
    %v2703 = vsel %vm1070, %v2428, 0
    %2705 = vmatprep.subr.bf16.mxu0 %v2616
    %2706 = vmatpush1.bf16.msra.mxu0 %v2615
    %2707 = vmatprep.subr.bf16.mxu0 %v2614
    %2708 = vmatpush1.bf16.msra.mxu0 %v2613
    %2709 = vmatprep.subr.bf16.mxu0 %v2612
    %2710 = vmatpush1.bf16.msra.mxu0 %v2611
    %2711 = vmatprep.subr.bf16.mxu0 %v2610
    %2712 = vmatpush1.bf16.msra.mxu0 %v2609
    %2713 = vmatprep.subr.bf16.mxu0 %v2608
    %2714 = vmatpush1.bf16.msra.mxu0 %v2607
    %2715 = vmatprep.subr.bf16.mxu0 %v2606
    %2716 = vmatpush1.bf16.msra.mxu0 %v2605
    %2717 = vmatprep.subr.bf16.mxu0 %v2604
    %2718 = vmatpush1.bf16.msra.mxu0 %v2603
    %2719 = vmatprep.subr.bf16.mxu0 %v2602
    %2720 = vmatpush1.bf16.msra.mxu0 %v2601
    %2721 = vmatprep.subr.bf16.mxu0 %v2632
    %2722 = vmatpush2.bf16.msra.mxu0 %v2631
    %2723 = vmatprep.subr.bf16.mxu0 %v2630
    %2724 = vmatpush2.bf16.msra.mxu0 %v2629
    %2725 = vmatprep.subr.bf16.mxu0 %v2628
    %2726 = vmatpush2.bf16.msra.mxu0 %v2627
    %2727 = vmatprep.subr.bf16.mxu0 %v2626
    %2728 = vmatpush2.bf16.msra.mxu0 %v2625
    %2729 = vmatprep.subr.bf16.mxu0 %v2624
    %2730 = vmatpush2.bf16.msra.mxu0 %v2623
    %2731 = vmatprep.subr.bf16.mxu0 %v2622
    %2732 = vmatpush2.bf16.msra.mxu0 %v2621
    %2733 = vmatprep.subr.bf16.mxu0 %v2620
    %2734 = vmatpush2.bf16.msra.mxu0 %v2619
    %2735 = vmatprep.subr.bf16.mxu0 %v2618
    %2736 = vmatpush2.bf16.msra.mxu0 %v2617
    %2737 = vmatprep.mubr.bf16.mxu0 %v2406
    %2738 = vmatmul.mubr.bf16.gmra.mxu0 %v2405
    %v2739 = vpop.f32.mrf.mxu0
    %v2740 = vadd.f32 %v2474, %v2739
    %v2741 = vpop.f32.mrf.mxu0
    %v2742 = vadd.f32 %v2478, %v2741
    %v2743 = vpop.f32.mrf.mxu0
    %v2744 = vadd.f32 %v2474, %v2743
    %v2745 = vpop.f32.mrf.mxu0
    %v2746 = vadd.f32 %v2478, %v2745
    %2747 = vmatprep.mubr.bf16.mxu0 %v2409
    %2748 = vmatmul.mubr.bf16.gmra.mxu0 %v2408
    %v2749 = vpop.f32.mrf.mxu0
    %v2750 = vadd.f32 %v2474, %v2749
    %v2751 = vpop.f32.mrf.mxu0
    %v2752 = vadd.f32 %v2478, %v2751
    %v2753 = vpop.f32.mrf.mxu0
    %v2754 = vadd.f32 %v2474, %v2753
    %v2755 = vpop.f32.mrf.mxu0
    %v2756 = vadd.f32 %v2478, %v2755
    %2757 = vmatprep.mubr.bf16.mxu0 %v2412
    %2758 = vmatmul.mubr.bf16.gmra.mxu0 %v2411
    %v2759 = vpop.f32.mrf.mxu0
    %v2760 = vadd.f32 %v2474, %v2759
    %v2761 = vpop.f32.mrf.mxu0
    %v2762 = vadd.f32 %v2478, %v2761
    %v2763 = vpop.f32.mrf.mxu0
    %v2764 = vadd.f32 %v2474, %v2763
    %v2765 = vpop.f32.mrf.mxu0
    %v2766 = vadd.f32 %v2478, %v2765
    %2767 = vmatprep.mubr.bf16.mxu0 %v2415
    %2768 = vmatmul.mubr.bf16.gmra.mxu0 %v2414
    %v2769 = vpop.f32.mrf.mxu0
    %v2770 = vadd.f32 %v2474, %v2769
    %v2771 = vpop.f32.mrf.mxu0
    %v2772 = vadd.f32 %v2478, %v2771
    %v2773 = vpop.f32.mrf.mxu0
    %v2774 = vadd.f32 %v2474, %v2773
    %v2775 = vpop.f32.mrf.mxu0
    %v2776 = vadd.f32 %v2478, %v2775
    %2777 = vmatprep.mubr.bf16.mxu0 %v2418
    %2778 = vmatmul.mubr.bf16.gmra.mxu0 %v2417
    %v2779 = vpop.f32.mrf.mxu0
    %v2780 = vadd.f32 %v2474, %v2779
    %v2781 = vpop.f32.mrf.mxu0
    %v2782 = vadd.f32 %v2478, %v2781
    %v2783 = vpop.f32.mrf.mxu0
    %v2784 = vadd.f32 %v2474, %v2783
    %v2785 = vpop.f32.mrf.mxu0
    %v2786 = vadd.f32 %v2478, %v2785
    %2787 = vmatprep.mubr.bf16.mxu0 %v2421
    %2788 = vmatmul.mubr.bf16.gmra.mxu0 %v2420
    %v2789 = vpop.f32.mrf.mxu0
    %v2790 = vadd.f32 %v2474, %v2789
    %v2791 = vpop.f32.mrf.mxu0
    %v2792 = vadd.f32 %v2478, %v2791
    %v2793 = vpop.f32.mrf.mxu0
    %v2794 = vadd.f32 %v2474, %v2793
    %v2795 = vpop.f32.mrf.mxu0
    %v2796 = vadd.f32 %v2478, %v2795
    %2797 = vmatprep.mubr.bf16.mxu0 %v2424
    %2798 = vmatmul.mubr.bf16.gmra.mxu0 %v2423
    %v2799 = vpop.f32.mrf.mxu0
    %v2800 = vadd.f32 %v2474, %v2799
    %v2801 = vpop.f32.mrf.mxu0
    %v2802 = vadd.f32 %v2478, %v2801
    %v2803 = vpop.f32.mrf.mxu0
    %v2804 = vadd.f32 %v2474, %v2803
    %v2805 = vpop.f32.mrf.mxu0
    %v2806 = vadd.f32 %v2478, %v2805
    %2807 = vmatprep.mubr.bf16.mxu0 %v2427
    %2808 = vmatmul.mubr.bf16.gmra.mxu0 %v2426
    %v2809 = vpop.f32.mrf.mxu0
    %v2810 = vadd.f32 %v2474, %v2809
    %v2811 = vpop.f32.mrf.mxu0
    %v2812 = vadd.f32 %v2478, %v2811
    %v2813 = vpop.f32.mrf.mxu0
    %v2814 = vadd.f32 %v2474, %v2813
    %v2815 = vpop.f32.mrf.mxu0
    %v2816 = vadd.f32 %v2478, %v2815
    %2817 = vdwg.mxu0
    %2818 = vmatprep.subr.bf16.mxu0 0
    %2819 = vmatpush1.bf16.msra.mxu0 0
    %2820 = vmatprep.subr.bf16.mxu0 0
    %2821 = vmatpush1.bf16.msra.mxu0 0
    %2822 = vmatprep.subr.bf16.mxu0 0
    %2823 = vmatpush1.bf16.msra.mxu0 0
    %2824 = vmatprep.subr.bf16.mxu0 0
    %2825 = vmatpush1.bf16.msra.mxu0 0
    %2826 = vmatprep.subr.bf16.mxu0 %v2640
    %2827 = vmatpush1.bf16.msra.mxu0 %v2639
    %2828 = vmatprep.subr.bf16.mxu0 %v2638
    %2829 = vmatpush1.bf16.msra.mxu0 %v2637
    %2830 = vmatprep.subr.bf16.mxu0 %v2636
    %2831 = vmatpush1.bf16.msra.mxu0 %v2635
    %2832 = vmatprep.subr.bf16.mxu0 %v2634
    %2833 = vmatpush1.bf16.msra.mxu0 %v2633
    %2834 = vmatprep.subr.bf16.mxu0 0
    %2835 = vmatpush2.bf16.msra.mxu0 0
    %2836 = vmatprep.subr.bf16.mxu0 0
    %2837 = vmatpush2.bf16.msra.mxu0 0
    %2838 = vmatprep.subr.bf16.mxu0 0
    %2839 = vmatpush2.bf16.msra.mxu0 0
    %2840 = vmatprep.subr.bf16.mxu0 0
    %2841 = vmatpush2.bf16.msra.mxu0 0
    %2842 = vmatprep.subr.bf16.mxu0 0
    %2843 = vmatpush2.bf16.msra.mxu0 0
    %2844 = vmatprep.subr.bf16.mxu0 0
    %2845 = vmatpush2.bf16.msra.mxu0 0
    %2846 = vmatprep.subr.bf16.mxu0 0
    %2847 = vmatpush2.bf16.msra.mxu0 0
    %2848 = vmatprep.subr.bf16.mxu0 0
    %2849 = vmatpush2.bf16.msra.mxu0 0
    %2850 = vmatprep.mubr.bf16.mxu0 0
    %2851 = vmatmul.mubr.bf16.gmra.mxu0 %v2682
    %v2852 = vpop.f32.mrf.mxu0
    %v2853 = vadd.f32 %v2740, %v2852
    %v2854 = vpop.f32.mrf.mxu0
    %v2855 = vadd.f32 %v2742, %v2854
    %v2856 = vpop.f32.mrf.mxu0
    %v2857 = vadd.f32 %v2744, %v2856
    %v2858 = vpop.f32.mrf.mxu0
    %v2859 = vadd.f32 %v2746, %v2858
    %2860 = vmatprep.mubr.bf16.mxu0 0
    %2861 = vmatmul.mubr.bf16.gmra.mxu0 %v2685
    %v2862 = vpop.f32.mrf.mxu0
    %v2863 = vadd.f32 %v2750, %v2862
    %v2864 = vpop.f32.mrf.mxu0
    %v2865 = vadd.f32 %v2752, %v2864
    %v2866 = vpop.f32.mrf.mxu0
    %v2867 = vadd.f32 %v2754, %v2866
    %v2868 = vpop.f32.mrf.mxu0
    %v2869 = vadd.f32 %v2756, %v2868
    %2870 = vmatprep.mubr.bf16.mxu0 0
    %2871 = vmatmul.mubr.bf16.gmra.mxu0 %v2688
    %v2872 = vpop.f32.mrf.mxu0
    %v2873 = vadd.f32 %v2760, %v2872
    %v2874 = vpop.f32.mrf.mxu0
    %v2875 = vadd.f32 %v2762, %v2874
    %v2876 = vpop.f32.mrf.mxu0
    %v2877 = vadd.f32 %v2764, %v2876
    %v2878 = vpop.f32.mrf.mxu0
    %v2879 = vadd.f32 %v2766, %v2878
    %2880 = vmatprep.mubr.bf16.mxu0 0
    %2881 = vmatmul.mubr.bf16.gmra.mxu0 %v2691
    %v2882 = vpop.f32.mrf.mxu0
    %v2883 = vadd.f32 %v2770, %v2882
    %v2884 = vpop.f32.mrf.mxu0
    %v2885 = vadd.f32 %v2772, %v2884
    %v2886 = vpop.f32.mrf.mxu0
    %v2887 = vadd.f32 %v2774, %v2886
    %v2888 = vpop.f32.mrf.mxu0
    %v2889 = vadd.f32 %v2776, %v2888
    %2890 = vmatprep.mubr.bf16.mxu0 0
    %2891 = vmatmul.mubr.bf16.gmra.mxu0 %v2694
    %v2892 = vpop.f32.mrf.mxu0
    %v2893 = vadd.f32 %v2780, %v2892
    %v2894 = vpop.f32.mrf.mxu0
    %v2895 = vadd.f32 %v2782, %v2894
    %v2896 = vpop.f32.mrf.mxu0
    %v2897 = vadd.f32 %v2784, %v2896
    %v2898 = vpop.f32.mrf.mxu0
    %v2899 = vadd.f32 %v2786, %v2898
    %2900 = vmatprep.mubr.bf16.mxu0 0
    %2901 = vmatmul.mubr.bf16.gmra.mxu0 %v2697
    %v2902 = vpop.f32.mrf.mxu0
    %v2903 = vadd.f32 %v2790, %v2902
    %v2904 = vpop.f32.mrf.mxu0
    %v2905 = vadd.f32 %v2792, %v2904
    %v2906 = vpop.f32.mrf.mxu0
    %v2907 = vadd.f32 %v2794, %v2906
    %v2908 = vpop.f32.mrf.mxu0
    %v2909 = vadd.f32 %v2796, %v2908
    %2910 = vmatprep.mubr.bf16.mxu0 0
    %2911 = vmatmul.mubr.bf16.gmra.mxu0 %v2700
    %v2912 = vpop.f32.mrf.mxu0
    %v2913 = vadd.f32 %v2800, %v2912
    %v2914 = vpop.f32.mrf.mxu0
    %v2915 = vadd.f32 %v2802, %v2914
    %v2916 = vpop.f32.mrf.mxu0
    %v2917 = vadd.f32 %v2804, %v2916
    %v2918 = vpop.f32.mrf.mxu0
    %v2919 = vadd.f32 %v2806, %v2918
    %2920 = vmatprep.mubr.bf16.mxu0 0
    %2921 = vmatmul.mubr.bf16.gmra.mxu0 %v2703
    %v2922 = vpop.f32.mrf.mxu0
    %v2923 = vadd.f32 %v2810, %v2922
    %v2924 = vpop.f32.mrf.mxu0
    %v2925 = vadd.f32 %v2812, %v2924
    %v2926 = vpop.f32.mrf.mxu0
    %v2927 = vadd.f32 %v2814, %v2926
    %v2928 = vpop.f32.mrf.mxu0
    %v2929 = vadd.f32 %v2816, %v2928
    %2930 = vdwg.mxu0
    %v2931 = vmax.f32 %v2853, 0.0
    %v2932 = vmax.f32 %v2855, 0.0
    %v2933 = vmax.f32 %v2857, 0.0
    %v2934 = vmax.f32 %v2859, 0.0
    %v2935 = vmax.f32 %v2863, 0.0
    %v2936 = vmax.f32 %v2865, 0.0
    %v2937 = vmax.f32 %v2867, 0.0
    %v2938 = vmax.f32 %v2869, 0.0
    %v2939 = vmax.f32 %v2873, 0.0
    %v2940 = vmax.f32 %v2875, 0.0
    %v2941 = vmax.f32 %v2877, 0.0
    %v2942 = vmax.f32 %v2879, 0.0
    %v2943 = vmax.f32 %v2883, 0.0
    %v2944 = vmax.f32 %v2885, 0.0
    %v2945 = vmax.f32 %v2887, 0.0
    %v2946 = vmax.f32 %v2889, 0.0
    %v2947 = vmax.f32 %v2893, 0.0
    %v2948 = vmax.f32 %v2895, 0.0
    %v2949 = vmax.f32 %v2897, 0.0
    %v2950 = vmax.f32 %v2899, 0.0
    %v2951 = vmax.f32 %v2903, 0.0
    %v2952 = vmax.f32 %v2905, 0.0
    %v2953 = vmax.f32 %v2907, 0.0
    %v2954 = vmax.f32 %v2909, 0.0
    %v2955 = vmax.f32 %v2913, 0.0
    %v2956 = vmax.f32 %v2915, 0.0
    %v2957 = vmax.f32 %v2917, 0.0
    %v2958 = vmax.f32 %v2919, 0.0
    %v2959 = vmax.f32 %v2923, 0.0
    %v2960 = vmax.f32 %v2925, 0.0
    %v2961 = vmax.f32 %v2927, 0.0
    %v2962 = vmax.f32 %v2929, 0.0
    %v2963 = vld [vmem:[%s15] sm:$0x3]
    %v2965 = vlaneseq
    %v2966 = vshrl.u32 %v2965, 7
    %v2967 = vsub.s32 0, %v2966
    %v2968 = vrot.slane %v2963, %v2967
    %v2969 = vlaneseq
    %v2970 = vshrl.u32 %v2969, 7
    %v2971 = vsub.s32 1, %v2970
    %v2972 = vrot.slane %v2963, %v2971
    %v2975 = vmul.f32 %v2931, %v2968
    %v2976 = vmul.f32 %v2932, %v2972
    %v2977 = vmul.f32 %v2933, %v2968
    %v2978 = vmul.f32 %v2934, %v2972
    %v2979 = vmul.f32 %v2935, %v2968
    %v2980 = vmul.f32 %v2936, %v2972
    %v2981 = vmul.f32 %v2937, %v2968
    %v2982 = vmul.f32 %v2938, %v2972
    %v2983 = vmul.f32 %v2939, %v2968
    %v2984 = vmul.f32 %v2940, %v2972
    %v2985 = vmul.f32 %v2941, %v2968
    %v2986 = vmul.f32 %v2942, %v2972
    %v2987 = vmul.f32 %v2943, %v2968
    %v2988 = vmul.f32 %v2944, %v2972
    %v2989 = vmul.f32 %v2945, %v2968
    %v2990 = vmul.f32 %v2946, %v2972
    %v2991 = vmul.f32 %v2947, %v2968
    %v2992 = vmul.f32 %v2948, %v2972
    %v2993 = vmul.f32 %v2949, %v2968
    %v2994 = vmul.f32 %v2950, %v2972
    %v2995 = vmul.f32 %v2951, %v2968
    %v2996 = vmul.f32 %v2952, %v2972
    %v2997 = vmul.f32 %v2953, %v2968
    %v2998 = vmul.f32 %v2954, %v2972
    %v2999 = vmul.f32 %v2955, %v2968
    %v3000 = vmul.f32 %v2956, %v2972
    %v3001 = vmul.f32 %v2957, %v2968
    %v3002 = vmul.f32 %v2958, %v2972
    %v3003 = vmul.f32 %v2959, %v2968
    %v3004 = vmul.f32 %v2960, %v2972
    %v3005 = vmul.f32 %v2961, %v2968
    %v3006 = vmul.f32 %v2962, %v2972
    %v3007 = vsel %vm511, %v2976, 0.0
    %v3008 = vadd.f32 %v2975, %v3007
    %3009 = vadd.xlane.f32.xlu0 %v3008
    %v3010 = vpop.xlane.xlu0 %3009
    %v3011 = vsel %vm511, %v2978, 0.0
    %v3012 = vadd.f32 %v2977, %v3011
    %3013 = vadd.xlane.f32.xlu0 %v3012
    %v3014 = vpop.xlane.xlu0 %3013
    %v3015 = vsel %vm511, %v2980, 0.0
    %v3016 = vadd.f32 %v2979, %v3015
    %3017 = vadd.xlane.f32.xlu0 %v3016
    %v3018 = vpop.xlane.xlu0 %3017
    %v3019 = vsel %vm511, %v2982, 0.0
    %v3020 = vadd.f32 %v2981, %v3019
    %3021 = vadd.xlane.f32.xlu0 %v3020
    %v3022 = vpop.xlane.xlu0 %3021
    %v3023 = vsel %vm511, %v2984, 0.0
    %v3024 = vadd.f32 %v2983, %v3023
    %3025 = vadd.xlane.f32.xlu0 %v3024
    %v3026 = vpop.xlane.xlu0 %3025
    %v3027 = vsel %vm511, %v2986, 0.0
    %v3028 = vadd.f32 %v2985, %v3027
    %3029 = vadd.xlane.f32.xlu0 %v3028
    %v3030 = vpop.xlane.xlu0 %3029
    %v3031 = vsel %vm511, %v2988, 0.0
    %v3032 = vadd.f32 %v2987, %v3031
    %3033 = vadd.xlane.f32.xlu0 %v3032
    %v3034 = vpop.xlane.xlu0 %3033
    %v3035 = vsel %vm511, %v2990, 0.0
    %v3036 = vadd.f32 %v2989, %v3035
    %3037 = vadd.xlane.f32.xlu0 %v3036
    %v3038 = vpop.xlane.xlu0 %3037
    %v3039 = vsel %vm511, %v2992, 0.0
    %v3040 = vadd.f32 %v2991, %v3039
    %3041 = vadd.xlane.f32.xlu0 %v3040
    %v3042 = vpop.xlane.xlu0 %3041
    %v3043 = vsel %vm511, %v2994, 0.0
    %v3044 = vadd.f32 %v2993, %v3043
    %3045 = vadd.xlane.f32.xlu0 %v3044
    %v3046 = vpop.xlane.xlu0 %3045
    %v3047 = vsel %vm511, %v2996, 0.0
    %v3048 = vadd.f32 %v2995, %v3047
    %3049 = vadd.xlane.f32.xlu0 %v3048
    %v3050 = vpop.xlane.xlu0 %3049
    %v3051 = vsel %vm511, %v2998, 0.0
    %v3052 = vadd.f32 %v2997, %v3051
    %3053 = vadd.xlane.f32.xlu0 %v3052
    %v3054 = vpop.xlane.xlu0 %3053
    %v3055 = vsel %vm511, %v3000, 0.0
    %v3056 = vadd.f32 %v2999, %v3055
    %3057 = vadd.xlane.f32.xlu0 %v3056
    %v3058 = vpop.xlane.xlu0 %3057
    %v3059 = vsel %vm511, %v3002, 0.0
    %v3060 = vadd.f32 %v3001, %v3059
    %3061 = vadd.xlane.f32.xlu0 %v3060
    %v3062 = vpop.xlane.xlu0 %3061
    %v3063 = vsel %vm511, %v3004, 0.0
    %v3064 = vadd.f32 %v3003, %v3063
    %3065 = vadd.xlane.f32.xlu0 %v3064
    %v3066 = vpop.xlane.xlu0 %3065
    %v3067 = vsel %vm511, %v3006, 0.0
    %v3068 = vadd.f32 %v3005, %v3067
    %3069 = vadd.xlane.f32.xlu0 %v3068
    %v3070 = vpop.xlane.xlu0 %3069
    %v3071 = vld [vmem:[#allocation2] sm:$0x1]
    %v3073 = vlaneseq
    %v3074 = vshrl.u32 %v3073, 7
    %v3075 = vsub.s32 0, %v3074
    %v3076 = vrot.slane %v3071, %v3075
    %v3078 = vadd.f32 %v3010, %v3076
    %v3079 = vadd.f32 %v3014, %v3076
    %v3080 = vadd.f32 %v3018, %v3076
    %v3081 = vadd.f32 %v3022, %v3076
    %v3082 = vadd.f32 %v3026, %v3076
    %v3083 = vadd.f32 %v3030, %v3076
    %v3084 = vadd.f32 %v3034, %v3076
    %v3085 = vadd.f32 %v3038, %v3076
    %v3086 = vadd.f32 %v3042, %v3076
    %v3087 = vadd.f32 %v3046, %v3076
    %v3088 = vadd.f32 %v3050, %v3076
    %v3089 = vadd.f32 %v3054, %v3076
    %v3090 = vadd.f32 %v3058, %v3076
    %v3091 = vadd.f32 %v3062, %v3076
    %v3092 = vadd.f32 %v3066, %v3076
    %v3093 = vadd.f32 %v3070, %v3076
    %v3094 = vlaneseq
    %v3095 = vand.u32 %v3094, 127
    %vm3096 = vcmp.eq.s32.totalorder %v3095, 8
    %3098 = vset.pattern.permute.xlu0 0
    %3099 = vperm.xlu0 %3098, %v3078
    %v3100 = vpop.permute.xlu0 %3099
    %3103 = vset.pattern.permute.xlu0 0
    %3104 = vperm.xlu0 %3103, %v3079
    %v3105 = vpop.permute.xlu0 %3104
    %3108 = vset.pattern.permute.xlu0 0
    %3109 = vperm.xlu0 %3108, %v3080
    %v3110 = vpop.permute.xlu0 %3109
    %3113 = vset.pattern.permute.xlu0 0
    %3114 = vperm.xlu0 %3113, %v3081
    %v3115 = vpop.permute.xlu0 %3114
    %3118 = vset.pattern.permute.xlu0 0
    %3119 = vperm.xlu0 %3118, %v3082
    %v3120 = vpop.permute.xlu0 %3119
    %3123 = vset.pattern.permute.xlu0 0
    %3124 = vperm.xlu0 %3123, %v3083
    %v3125 = vpop.permute.xlu0 %3124
    %3128 = vset.pattern.permute.xlu0 0
    %3129 = vperm.xlu0 %3128, %v3084
    %v3130 = vpop.permute.xlu0 %3129
    %3133 = vset.pattern.permute.xlu0 0
    %3134 = vperm.xlu0 %3133, %v3085
    %v3135 = vpop.permute.xlu0 %3134
    %3138 = vset.pattern.permute.xlu0 0
    %3139 = vperm.xlu0 %3138, %v3086
    %v3140 = vpop.permute.xlu0 %3139
    %3143 = vset.pattern.permute.xlu0 0
    %3144 = vperm.xlu0 %3143, %v3087
    %v3145 = vpop.permute.xlu0 %3144
    %3148 = vset.pattern.permute.xlu0 0
    %3149 = vperm.xlu0 %3148, %v3088
    %v3150 = vpop.permute.xlu0 %3149
    %3153 = vset.pattern.permute.xlu0 0
    %3154 = vperm.xlu0 %3153, %v3089
    %v3155 = vpop.permute.xlu0 %3154
    %3158 = vset.pattern.permute.xlu0 0
    %3159 = vperm.xlu0 %3158, %v3090
    %v3160 = vpop.permute.xlu0 %3159
    %3163 = vset.pattern.permute.xlu0 0
    %3164 = vperm.xlu0 %3163, %v3091
    %v3165 = vpop.permute.xlu0 %3164
    %3168 = vset.pattern.permute.xlu0 0
    %3169 = vperm.xlu0 %3168, %v3092
    %v3170 = vpop.permute.xlu0 %3169
    %3173 = vset.pattern.permute.xlu0 0
    %3174 = vperm.xlu0 %3173, %v3093
    %v3175 = vpop.permute.xlu0 %3174
    %v3177 = vsel %vm3096, %v3100, %v1705
    %v3178 = vsel %vm3096, %v3105, %v1706
    %v3179 = vsel %vm3096, %v3110, %v1707
    %v3180 = vsel %vm3096, %v3115, %v1708
    %v3181 = vsel %vm3096, %v3120, %v1709
    %v3182 = vsel %vm3096, %v3125, %v1710
    %v3183 = vsel %vm3096, %v3130, %v1711
    %v3184 = vsel %vm3096, %v3135, %v1712
    %v3185 = vsel %vm3096, %v3140, %v1713
    %v3186 = vsel %vm3096, %v3145, %v1714
    %v3187 = vsel %vm3096, %v3150, %v1715
    %v3188 = vsel %vm3096, %v3155, %v1716
    %v3189 = vsel %vm3096, %v3160, %v1717
    %v3190 = vsel %vm3096, %v3165, %v1718
    %v3191 = vsel %vm3096, %v3170, %v1719
    %v3192 = vsel %vm3096, %v3175, %v1720
    %3193 = vst [vmem:[#allocation3] sm:$0xff] %v3177
    %3194 = vst [vmem:[#allocation3 + $0x8] sm:$0xff] %v3178
    %3195 = vst [vmem:[#allocation3 + $0x10] sm:$0xff] %v3179
    %3196 = vst [vmem:[#allocation3 + $0x18] sm:$0xff] %v3180
    %3197 = vst [vmem:[#allocation3 + $0x20] sm:$0xff] %v3181
    %3198 = vst [vmem:[#allocation3 + $0x28] sm:$0xff] %v3182
    %3199 = vst [vmem:[#allocation3 + $0x30] sm:$0xff] %v3183
    %3200 = vst [vmem:[#allocation3 + $0x38] sm:$0xff] %v3184
    %3201 = vst [vmem:[#allocation3 + $0x40] sm:$0xff] %v3185
    %3202 = vst [vmem:[#allocation3 + $0x48] sm:$0xff] %v3186
    %3203 = vst [vmem:[#allocation3 + $0x50] sm:$0xff] %v3187
    %3204 = vst [vmem:[#allocation3 + $0x58] sm:$0xff] %v3188
    %3205 = vst [vmem:[#allocation3 + $0x60] sm:$0xff] %v3189
    %3206 = vst [vmem:[#allocation3 + $0x68] sm:$0xff] %v3190
    %3207 = vst [vmem:[#allocation3 + $0x70] sm:$0xff] %v3191
    %3208 = vst [vmem:[#allocation3 + $0x78] sm:$0xff] %v3192
    // Predicated region
    $region70: #{tpu_custom_call.1} parent=1 // pred_check
      _
    $region71: #{tpu_custom_call.1} parent=1 // pred_check_branch
      %3210 = sbr.rel (0) target = $region73
    $region72: #{tpu_custom_call.1} parent=1 // pred_region
      %s3212 = ssub.s32 2048, 2048
      %3213 = vsyncadd [#allocation4], %s3212
      %s3214 = sshll.u32 [#allocation3], 4
      %s3215 = int_to_ptr.vmem [resolvable:$true] %s3214
      %3220 = dma.vmem_to_hbm [thread:$0]  %s3215, 2048, %s17, [#allocation4], 128, 128, 8
    $region73: #{tpu_custom_call.1} parent=1 // pred_fallthru
      _
    // Predicated region
    $region74: #{tpu_custom_call.1} parent=1 // pred_check
      _
    $region75: #{tpu_custom_call.1} parent=1 // pred_check_branch
      %3222 = sbr.rel (0) target = $region77
    $region76: #{tpu_custom_call.1} parent=1 // pred_region
      %3223 = dma.done [#allocation4], 2048
    $region77: #{tpu_custom_call.1} parent=1 // pred_fallthru
      _
    %3224 = vsyncpa [#allocation4], 1

</llo_original>
